<compile_context>
chip_gen: v6e
topology: v6e:2x2x1
jax: 0.10.0
libtpu: 0.0.40
codegen_flags: <defaults>
</compile_context>

<pallas_src>
import math

import jax
import jax.numpy as jnp
from jax.experimental import pallas as pl
from jax.experimental.pallas import tpu as pltpu

_MIN_PALLAS_BYTES = 1 << 20      # below this, jnp.swapaxes wins (launch overhead)
_MIN_OUT_LANE = 128              # output last dim (T) must be lane-dense
_TARGET_STEP_BYTES = 1 << 20     # aim for >= ~1 MiB moved per grid step
_MAX_BUF_BYTES = 4 << 20         # per-buffer VMEM cap (double-buffered in+out ~16 MiB)
_VMEM_LIMIT_BYTES = 40 << 20     # safe on v5e/v6e (128 MiB phys) and v7x (64 MiB phys)


def _swap_tile_kernel(x_ref, o_ref):
    # x_ref: (bB, tT, tC), o_ref: (bB, tC, tT).  swapaxes (not .T!) so batched
    # 3D blocks transpose only the trailing two axes (XLU per-plane transpose).
    o_ref[...] = jnp.swapaxes(x_ref[...], -1, -2)


def _tile_caps(itemsize):
    # Lane-ish dim capped at 1024; sublane dim scales with sub-32-bit packing
    # so bytes/buffer stay ~constant (f32: 1024x1024 = 4 MiB, bf16: 2048x1024).
    lane_cap = 1024
    sublane_cap = 1024 * max(1, 4 // int(itemsize))
    return sublane_cap, lane_cap


def _pallas_swap_last_two(x3):
    """(B, T, C) -> (B, C, T) via a tiled / batch-blocked Pallas transpose."""
    B, T, C = x3.shape
    itemsize = jnp.dtype(x3.dtype).itemsize
    tT_cap, tC_cap = _tile_caps(itemsize)

    # Block dims on the last two axes must be multiples of (8, 128) or equal
    # to the full dim; caps are multiples of 128, full dims are always legal.
    tT = T if T <= tT_cap else tT_cap
    tC = C if C <= tC_cap else tC_cap

    # Batch-block when a single (T, C) plane is small, so each pipeline step
    # moves >= ~1 MiB (amortizes the ~0.35 us per-step overhead).
    plane_bytes = tT * tC * itemsize
    bB = 1
    if T <= tT_cap and C <= tC_cap and plane_bytes < _TARGET_STEP_BYTES:
        bB = -(-_TARGET_STEP_BYTES // plane_bytes)            # ceil
        bB = min(bB, max(1, _MAX_BUF_BYTES // plane_bytes))   # VMEM cap
        bB = min(bB, B)

    grid = (pl.cdiv(B, bB), pl.cdiv(C, tC), pl.cdiv(T, tT))

    cost = pl.CostEstimate(
        flops=0,
        transcendentals=0,
        bytes_accessed=2 * B * T * C * itemsize,
    )

    return pl.pallas_call(
        _swap_tile_kernel,
        out_shape=jax.ShapeDtypeStruct((B, C, T), x3.dtype),
        grid=grid,
        in_specs=[
            pl.BlockSpec((bB, tT, tC), lambda bi, cj, ti: (bi, ti, cj)),
        ],
        out_specs=pl.BlockSpec((bB, tC, tT), lambda bi, cj, ti: (bi, cj, ti)),
        compiler_params=pltpu.CompilerParams(
            dimension_semantics=("parallel", "parallel", "parallel"),
            vmem_limit_bytes=_VMEM_LIMIT_BYTES,
        ),
        cost_estimate=cost,
    )(x3)


def pallas_transpose(x, dim_1, dim_2):
    """Equivalent of torch.Tensor.transpose(dim_1, dim_2)."""
    ndim = x.ndim
    if ndim == 0:
        return x
    d1 = dim_1 % ndim
    d2 = dim_2 % ndim
    if d1 == d2:
        return x
    lo, hi = sorted((d1, d2))

    itemsize = jnp.dtype(x.dtype).itemsize
    total_bytes = x.size * itemsize

    if (lo, hi) != (ndim - 2, ndim - 1):
        # Generic dim pair: single XLA transpose pass (no extra HBM traffic).
        # TODO(synk): fold leading-axis swaps into the Pallas index_map for a
        # fused single-pass Pallas path.
        return jnp.swapaxes(x, d1, d2)

    T, C = x.shape[-2], x.shape[-1]
    if total_bytes < _MIN_PALLAS_BYTES or T < _MIN_OUT_LANE:
        # Small-tensor / short-sequence fallback: below the pallas_call
        # break-even, or output lane dim would force masked partial stores.
        return jnp.swapaxes(x, -1, -2)

    lead = x.shape[:-2]
    B = math.prod(lead) if lead else 1
    x3 = x.reshape(B, T, C)
    out3 = _pallas_swap_last_two(x3)          # (B, C, T)
    return out3.reshape(lead + (C, T))


class Transpose:
    """Mirror of the PyTorch module (no parameters)."""

    def __init__(self, dim_1, dim_2):
        self.dim_1 = dim_1
        self.dim_2 = dim_2

    def __call__(self, x):
        return pallas_transpose(x, self.dim_1, self.dim_2)


if __name__ == "__main__":
    key = jax.random.PRNGKey(0)

    # 1) FastSpeech2 predictor activations (batch, seq, hidden): tiny -> the
    #    small-tensor fallback path (jnp.swapaxes), semantics identical.
    B, T, C = 2, 8, 32
    x = jax.random.normal(key, (B, T, C), dtype=jnp.float32)
    mod = Transpose(1, 2)
    y = jax.block_until_ready(mod(x))
    assert y.shape == (B, C, T), y.shape
    assert y.dtype == x.dtype
    assert bool(jnp.array_equal(y, jnp.swapaxes(x, 1, 2)))

    # 2) Generic dim pair (exercises the non-last-two fallback).
    y2 = jax.block_until_ready(Transpose(0, 2)(x))
    assert bool(jnp.array_equal(y2, jnp.swapaxes(x, 0, 2)))

    # 3) Pallas path, batch-blocked full-dim tiles.
    k1, k2, k3, k4 = jax.random.split(key, 4)
    xa = jax.random.normal(k1, (2, 384, 512), dtype=jnp.float32)
    ya = jax.block_until_ready(mod(xa))
    assert bool(jnp.array_equal(ya, jnp.swapaxes(xa, 1, 2)))

    # 4) Pallas path, ragged (non-8/128-aligned) full-dim blocks.
    xb = jax.random.normal(k2, (1, 600, 777), dtype=jnp.float32)
    yb = jax.block_until_ready(mod(xb))
    assert bool(jnp.array_equal(yb, jnp.swapaxes(xb, 1, 2)))

    # 5) Pallas path, tiled T (> tile cap) with a ragged last tile.
    xc = jax.random.normal(k3, (1, 1152, 256), dtype=jnp.float32)
    yc = jax.block_until_ready(mod(xc))
    assert bool(jnp.array_equal(yc, jnp.swapaxes(xc, 1, 2)))

    # 6) Pallas path, bf16 + batch blocking with a ragged last batch block.
    xd = jax.random.normal(k4, (16, 128, 192), dtype=jnp.float32)
    yd = jax.block_until_ready(mod(xd))
    assert bool(jnp.array_equal(yd, jnp.swapaxes(xd, 1, 2)))

    xe = jax.random.normal(k4, (4, 256, 512), dtype=jnp.bfloat16)
    ye = jax.block_until_ready(mod(xe))
    assert ye.dtype == jnp.bfloat16
    assert bool(jnp.array_equal(ye, jnp.swapaxes(xe, 1, 2)))

    print("KERNEL_OK")
</pallas_src>

<mosaic_0001>
module attributes {stable_mosaic.version = 11 : i64} {
  func.func @_swap_tile_kernel(%arg0: i32, %arg1: i32, %arg2: i32, %arg3: memref<2x384x512xf32, #tpu.memory_space<vmem>>, %arg4: memref<2x512x384xf32, #tpu.memory_space<vmem>>) attributes {dimension_semantics = [#tpu.dimension_semantics<parallel>, #tpu.dimension_semantics<parallel>, #tpu.dimension_semantics<parallel>], iteration_bounds = array<i64: 1, 1, 1>, scalar_prefetch = 0 : i64, scratch_operands = 0 : i64, tpu.core_type = #tpu.core_type<tc>, window_params = [{transform_indices = @transform_0, window_bounds = array<i64: 2, 384, 512>}, {transform_indices = @transform_1, window_bounds = array<i64: 2, 512, 384>}]} {
    %c0 = arith.constant 0 : index
    %c0_0 = arith.constant 0 : index
    %c0_1 = arith.constant 0 : index
    %0 = vector.load %arg3[%c0, %c0_0, %c0_1] : memref<2x384x512xf32, #tpu.memory_space<vmem>>, vector<2x384x512xf32>
    %1 = tpu.transpose %0, [0, 2, 1] : vector<2x384x512xf32> -> vector<2x512x384xf32>
    %c0_2 = arith.constant 0 : index
    %c0_3 = arith.constant 0 : index
    %c0_4 = arith.constant 0 : index
    %2 = vector.load %arg4[%c0_2, %c0_3, %c0_4] : memref<2x512x384xf32, #tpu.memory_space<vmem>>, vector<2x512x384xf32>
    tpu.vector_store %arg4[%c0_2, %c0_3, %c0_4], %1 {strides = array<i32>} : memref<2x512x384xf32, #tpu.memory_space<vmem>>, vector<2x512x384xf32>,
    return
  }
  func.func @transform_0(%arg0: i32, %arg1: i32, %arg2: i32) -> (i32, i32, i32) {
    %c0_i32 = arith.constant 0 : i32
    return %arg0, %arg2, %arg1 : i32, i32, i32
  }
  func.func @transform_1(%arg0: i32, %arg1: i32, %arg2: i32) -> (i32, i32, i32) {
    %c0_i32 = arith.constant 0 : i32
    return %arg0, %arg1, %arg2 : i32, i32, i32
  }
}

</mosaic_0001>

<llo_original>
// kernel: tpu_custom_call.1
$region0: #{tpu_custom_call.1}
  #allocation0 [shape = 'u32[]', space=smem, size = 0x4, offset = 0x4, fixed_abs, tag = 'smem constant byte address 0x4 - core index']
  #allocation1 [shape = 'u32[144,128]{1,0:T(1,128)}', space=vmem, size = 0x12000, scoped, tag = 'internal scratch']
  %s0 = inlined_call_operand.hbm [shape: f32[2,384,512], index: 0, kind: input, shape index: {}]
  %s1 = inlined_call_operand.hbm [shape: f32[2,512,384], index: 1, kind: output, shape index: {}]
  %s2 = sld [smem:[#allocation0]]
  $region18: #{tpu_custom_call.1} parent=0
    _
  %s4 = ssub.s32 1, %s2
  %s5 = scalar_select 0, %s4, %s2
  $region1: #{tpu_custom_call.1} parent=0
    #allocation2 [shape = 'u8[1572864]{0}', space=vmem, size = 0x180000, scoped, tag = 'input window, operand 0, single buffered']
    #allocation3 [shape = 's32[1]{0}', space=sflag, size = 0x4, scoped, tag = 'scoped memory for tpu_custom_call.1']
    #allocation4 [shape = 's32[1]{0}', space=sflag, size = 0x4, scoped, tag = 'scoped memory for tpu_custom_call.1']
    #allocation5 [shape = 'u8[1572864]{0}', space=vmem, size = 0x180000, scoped, tag = 'output window, operand 0, single buffered']
    %6 = vsyncpa [#allocation3], 0
    %7 = vsyncpa [#allocation4], 0
    // Predicated region
    $region2: #{tpu_custom_call.1} parent=1 // pred_check
      _
    $region3: #{tpu_custom_call.1} parent=1 // pred_check_branch
      %9 = sbr.rel (0) target = $region5
    $region4: #{tpu_custom_call.1} parent=1 // pred_region
      %s11 = ssub.s32 49152, 49152
      %12 = vsyncadd [#allocation3], %s11
      %s13 = sshll.u32 [#allocation2], 4
      %s14 = int_to_ptr.vmem [resolvable:$true] %s13
      %19 = dma.hbm_to_vmem [thread:$0]  %s0, 49152, %s14, [#allocation3], 512, 512, 32
    $region5: #{tpu_custom_call.1} parent=1 // pred_fallthru
      _
    // Predicated region
    $region6: #{tpu_custom_call.1} parent=1 // pred_check
      _
    $region7: #{tpu_custom_call.1} parent=1 // pred_check_branch
      %21 = sbr.rel (0) target = $region9
    $region8: #{tpu_custom_call.1} parent=1 // pred_region
      %22 = dma.done [#allocation3], 49152
    $region9: #{tpu_custom_call.1} parent=1 // pred_fallthru
      _
    %v23 = vld [vmem:[#allocation2] sm:$0xff]
    %v24 = vld [vmem:[#allocation2 + $0x8] sm:$0xff]
    %v25 = vld [vmem:[#allocation2 + $0x10] sm:$0xff]
    %v26 = vld [vmem:[#allocation2 + $0x18] sm:$0xff]
    %v27 = vld [vmem:[#allocation2 + $0x20] sm:$0xff]
    %v28 = vld [vmem:[#allocation2 + $0x28] sm:$0xff]
    %v29 = vld [vmem:[#allocation2 + $0x30] sm:$0xff]
    %v30 = vld [vmem:[#allocation2 + $0x38] sm:$0xff]
    %v31 = vld [vmem:[#allocation2 + $0x40] sm:$0xff]
    %v32 = vld [vmem:[#allocation2 + $0x48] sm:$0xff]
    %v33 = vld [vmem:[#allocation2 + $0x50] sm:$0xff]
    %v34 = vld [vmem:[#allocation2 + $0x58] sm:$0xff]
    %v35 = vld [vmem:[#allocation2 + $0x60] sm:$0xff]
    %v36 = vld [vmem:[#allocation2 + $0x68] sm:$0xff]
    %v37 = vld [vmem:[#allocation2 + $0x70] sm:$0xff]
    %v38 = vld [vmem:[#allocation2 + $0x78] sm:$0xff]
    %v39 = vld [vmem:[#allocation2 + $0x80] sm:$0xff]
    %v40 = vld [vmem:[#allocation2 + $0x88] sm:$0xff]
    %v41 = vld [vmem:[#allocation2 + $0x90] sm:$0xff]
    %v42 = vld [vmem:[#allocation2 + $0x98] sm:$0xff]
    %v43 = vld [vmem:[#allocation2 + $0xa0] sm:$0xff]
    %v44 = vld [vmem:[#allocation2 + $0xa8] sm:$0xff]
    %v45 = vld [vmem:[#allocation2 + $0xb0] sm:$0xff]
    %v46 = vld [vmem:[#allocation2 + $0xb8] sm:$0xff]
    %v47 = vld [vmem:[#allocation2 + $0xc0] sm:$0xff]
    %v48 = vld [vmem:[#allocation2 + $0xc8] sm:$0xff]
    %v49 = vld [vmem:[#allocation2 + $0xd0] sm:$0xff]
    %v50 = vld [vmem:[#allocation2 + $0xd8] sm:$0xff]
    %v51 = vld [vmem:[#allocation2 + $0xe0] sm:$0xff]
    %v52 = vld [vmem:[#allocation2 + $0xe8] sm:$0xff]
    %v53 = vld [vmem:[#allocation2 + $0xf0] sm:$0xff]
    %v54 = vld [vmem:[#allocation2 + $0xf8] sm:$0xff]
    %v55 = vld [vmem:[#allocation2 + $0x100] sm:$0xff]
    %v56 = vld [vmem:[#allocation2 + $0x108] sm:$0xff]
    %v57 = vld [vmem:[#allocation2 + $0x110] sm:$0xff]
    %v58 = vld [vmem:[#allocation2 + $0x118] sm:$0xff]
    %v59 = vld [vmem:[#allocation2 + $0x120] sm:$0xff]
    %v60 = vld [vmem:[#allocation2 + $0x128] sm:$0xff]
    %v61 = vld [vmem:[#allocation2 + $0x130] sm:$0xff]
    %v62 = vld [vmem:[#allocation2 + $0x138] sm:$0xff]
    %v63 = vld [vmem:[#allocation2 + $0x140] sm:$0xff]
    %v64 = vld [vmem:[#allocation2 + $0x148] sm:$0xff]
    %v65 = vld [vmem:[#allocation2 + $0x150] sm:$0xff]
    %v66 = vld [vmem:[#allocation2 + $0x158] sm:$0xff]
    %v67 = vld [vmem:[#allocation2 + $0x160] sm:$0xff]
    %v68 = vld [vmem:[#allocation2 + $0x168] sm:$0xff]
    %v69 = vld [vmem:[#allocation2 + $0x170] sm:$0xff]
    %v70 = vld [vmem:[#allocation2 + $0x178] sm:$0xff]
    %v71 = vld [vmem:[#allocation2 + $0x180] sm:$0xff]
    %v72 = vld [vmem:[#allocation2 + $0x188] sm:$0xff]
    %v73 = vld [vmem:[#allocation2 + $0x190] sm:$0xff]
    %v74 = vld [vmem:[#allocation2 + $0x198] sm:$0xff]
    %v75 = vld [vmem:[#allocation2 + $0x1a0] sm:$0xff]
    %v76 = vld [vmem:[#allocation2 + $0x1a8] sm:$0xff]
    %v77 = vld [vmem:[#allocation2 + $0x1b0] sm:$0xff]
    %v78 = vld [vmem:[#allocation2 + $0x1b8] sm:$0xff]
    %v79 = vld [vmem:[#allocation2 + $0x1c0] sm:$0xff]
    %v80 = vld [vmem:[#allocation2 + $0x1c8] sm:$0xff]
    %v81 = vld [vmem:[#allocation2 + $0x1d0] sm:$0xff]
    %v82 = vld [vmem:[#allocation2 + $0x1d8] sm:$0xff]
    %v83 = vld [vmem:[#allocation2 + $0x1e0] sm:$0xff]
    %v84 = vld [vmem:[#allocation2 + $0x1e8] sm:$0xff]
    %v85 = vld [vmem:[#allocation2 + $0x1f0] sm:$0xff]
    %v86 = vld [vmem:[#allocation2 + $0x1f8] sm:$0xff]
    %v87 = vld [vmem:[#allocation2 + $0x200] sm:$0xff]
    %v88 = vld [vmem:[#allocation2 + $0x208] sm:$0xff]
    %v89 = vld [vmem:[#allocation2 + $0x210] sm:$0xff]
    %v90 = vld [vmem:[#allocation2 + $0x218] sm:$0xff]
    %v91 = vld [vmem:[#allocation2 + $0x220] sm:$0xff]
    %v92 = vld [vmem:[#allocation2 + $0x228] sm:$0xff]
    %v93 = vld [vmem:[#allocation2 + $0x230] sm:$0xff]
    %v94 = vld [vmem:[#allocation2 + $0x238] sm:$0xff]
    %v95 = vld [vmem:[#allocation2 + $0x240] sm:$0xff]
    %v96 = vld [vmem:[#allocation2 + $0x248] sm:$0xff]
    %v97 = vld [vmem:[#allocation2 + $0x250] sm:$0xff]
    %v98 = vld [vmem:[#allocation2 + $0x258] sm:$0xff]
    %v99 = vld [vmem:[#allocation2 + $0x260] sm:$0xff]
    %v100 = vld [vmem:[#allocation2 + $0x268] sm:$0xff]
    %v101 = vld [vmem:[#allocation2 + $0x270] sm:$0xff]
    %v102 = vld [vmem:[#allocation2 + $0x278] sm:$0xff]
    %v103 = vld [vmem:[#allocation2 + $0x280] sm:$0xff]
    %v104 = vld [vmem:[#allocation2 + $0x288] sm:$0xff]
    %v105 = vld [vmem:[#allocation2 + $0x290] sm:$0xff]
    %v106 = vld [vmem:[#allocation2 + $0x298] sm:$0xff]
    %v107 = vld [vmem:[#allocation2 + $0x2a0] sm:$0xff]
    %v108 = vld [vmem:[#allocation2 + $0x2a8] sm:$0xff]
    %v109 = vld [vmem:[#allocation2 + $0x2b0] sm:$0xff]
    %v110 = vld [vmem:[#allocation2 + $0x2b8] sm:$0xff]
    %v111 = vld [vmem:[#allocation2 + $0x2c0] sm:$0xff]
    %v112 = vld [vmem:[#allocation2 + $0x2c8] sm:$0xff]
    %v113 = vld [vmem:[#allocation2 + $0x2d0] sm:$0xff]
    %v114 = vld [vmem:[#allocation2 + $0x2d8] sm:$0xff]
    %v115 = vld [vmem:[#allocation2 + $0x2e0] sm:$0xff]
    %v116 = vld [vmem:[#allocation2 + $0x2e8] sm:$0xff]
    %v117 = vld [vmem:[#allocation2 + $0x2f0] sm:$0xff]
    %v118 = vld [vmem:[#allocation2 + $0x2f8] sm:$0xff]
    %v119 = vld [vmem:[#allocation2 + $0x300] sm:$0xff]
    %v120 = vld [vmem:[#allocation2 + $0x308] sm:$0xff]
    %v121 = vld [vmem:[#allocation2 + $0x310] sm:$0xff]
    %v122 = vld [vmem:[#allocation2 + $0x318] sm:$0xff]
    %v123 = vld [vmem:[#allocation2 + $0x320] sm:$0xff]
    %v124 = vld [vmem:[#allocation2 + $0x328] sm:$0xff]
    %v125 = vld [vmem:[#allocation2 + $0x330] sm:$0xff]
    %v126 = vld [vmem:[#allocation2 + $0x338] sm:$0xff]
    %v127 = vld [vmem:[#allocation2 + $0x340] sm:$0xff]
    %v128 = vld [vmem:[#allocation2 + $0x348] sm:$0xff]
    %v129 = vld [vmem:[#allocation2 + $0x350] sm:$0xff]
    %v130 = vld [vmem:[#allocation2 + $0x358] sm:$0xff]
    %v131 = vld [vmem:[#allocation2 + $0x360] sm:$0xff]
    %v132 = vld [vmem:[#allocation2 + $0x368] sm:$0xff]
    %v133 = vld [vmem:[#allocation2 + $0x370] sm:$0xff]
    %v134 = vld [vmem:[#allocation2 + $0x378] sm:$0xff]
    %v135 = vld [vmem:[#allocation2 + $0x380] sm:$0xff]
    %v136 = vld [vmem:[#allocation2 + $0x388] sm:$0xff]
    %v137 = vld [vmem:[#allocation2 + $0x390] sm:$0xff]
    %v138 = vld [vmem:[#allocation2 + $0x398] sm:$0xff]
    %v139 = vld [vmem:[#allocation2 + $0x3a0] sm:$0xff]
    %v140 = vld [vmem:[#allocation2 + $0x3a8] sm:$0xff]
    %v141 = vld [vmem:[#allocation2 + $0x3b0] sm:$0xff]
    %v142 = vld [vmem:[#allocation2 + $0x3b8] sm:$0xff]
    %v143 = vld [vmem:[#allocation2 + $0x3c0] sm:$0xff]
    %v144 = vld [vmem:[#allocation2 + $0x3c8] sm:$0xff]
    %v145 = vld [vmem:[#allocation2 + $0x3d0] sm:$0xff]
    %v146 = vld [vmem:[#allocation2 + $0x3d8] sm:$0xff]
    %v147 = vld [vmem:[#allocation2 + $0x3e0] sm:$0xff]
    %v148 = vld [vmem:[#allocation2 + $0x3e8] sm:$0xff]
    %v149 = vld [vmem:[#allocation2 + $0x3f0] sm:$0xff]
    %v150 = vld [vmem:[#allocation2 + $0x3f8] sm:$0xff]
    %v151 = vld [vmem:[#allocation2 + $0x400] sm:$0xff]
    %v152 = vld [vmem:[#allocation2 + $0x408] sm:$0xff]
    %v153 = vld [vmem:[#allocation2 + $0x410] sm:$0xff]
    %v154 = vld [vmem:[#allocation2 + $0x418] sm:$0xff]
    %v155 = vld [vmem:[#allocation2 + $0x420] sm:$0xff]
    %v156 = vld [vmem:[#allocation2 + $0x428] sm:$0xff]
    %v157 = vld [vmem:[#allocation2 + $0x430] sm:$0xff]
    %v158 = vld [vmem:[#allocation2 + $0x438] sm:$0xff]
    %v159 = vld [vmem:[#allocation2 + $0x440] sm:$0xff]
    %v160 = vld [vmem:[#allocation2 + $0x448] sm:$0xff]
    %v161 = vld [vmem:[#allocation2 + $0x450] sm:$0xff]
    %v162 = vld [vmem:[#allocation2 + $0x458] sm:$0xff]
    %v163 = vld [vmem:[#allocation2 + $0x460] sm:$0xff]
    %v164 = vld [vmem:[#allocation2 + $0x468] sm:$0xff]
    %v165 = vld [vmem:[#allocation2 + $0x470] sm:$0xff]
    %v166 = vld [vmem:[#allocation2 + $0x478] sm:$0xff]
    %v167 = vld [vmem:[#allocation2 + $0x480] sm:$0xff]
    %v168 = vld [vmem:[#allocation2 + $0x488] sm:$0xff]
    %v169 = vld [vmem:[#allocation2 + $0x490] sm:$0xff]
    %v170 = vld [vmem:[#allocation2 + $0x498] sm:$0xff]
    %v171 = vld [vmem:[#allocation2 + $0x4a0] sm:$0xff]
    %v172 = vld [vmem:[#allocation2 + $0x4a8] sm:$0xff]
    %v173 = vld [vmem:[#allocation2 + $0x4b0] sm:$0xff]
    %v174 = vld [vmem:[#allocation2 + $0x4b8] sm:$0xff]
    %v175 = vld [vmem:[#allocation2 + $0x4c0] sm:$0xff]
    %v176 = vld [vmem:[#allocation2 + $0x4c8] sm:$0xff]
    %v177 = vld [vmem:[#allocation2 + $0x4d0] sm:$0xff]
    %v178 = vld [vmem:[#allocation2 + $0x4d8] sm:$0xff]
    %v179 = vld [vmem:[#allocation2 + $0x4e0] sm:$0xff]
    %v180 = vld [vmem:[#allocation2 + $0x4e8] sm:$0xff]
    %v181 = vld [vmem:[#allocation2 + $0x4f0] sm:$0xff]
    %v182 = vld [vmem:[#allocation2 + $0x4f8] sm:$0xff]
    %v183 = vld [vmem:[#allocation2 + $0x500] sm:$0xff]
    %v184 = vld [vmem:[#allocation2 + $0x508] sm:$0xff]
    %v185 = vld [vmem:[#allocation2 + $0x510] sm:$0xff]
    %v186 = vld [vmem:[#allocation2 + $0x518] sm:$0xff]
    %v187 = vld [vmem:[#allocation2 + $0x520] sm:$0xff]
    %v188 = vld [vmem:[#allocation2 + $0x528] sm:$0xff]
    %v189 = vld [vmem:[#allocation2 + $0x530] sm:$0xff]
    %v190 = vld [vmem:[#allocation2 + $0x538] sm:$0xff]
    %v191 = vld [vmem:[#allocation2 + $0x540] sm:$0xff]
    %v192 = vld [vmem:[#allocation2 + $0x548] sm:$0xff]
    %v193 = vld [vmem:[#allocation2 + $0x550] sm:$0xff]
    %v194 = vld [vmem:[#allocation2 + $0x558] sm:$0xff]
    %v195 = vld [vmem:[#allocation2 + $0x560] sm:$0xff]
    %v196 = vld [vmem:[#allocation2 + $0x568] sm:$0xff]
    %v197 = vld [vmem:[#allocation2 + $0x570] sm:$0xff]
    %v198 = vld [vmem:[#allocation2 + $0x578] sm:$0xff]
    %v199 = vld [vmem:[#allocation2 + $0x580] sm:$0xff]
    %v200 = vld [vmem:[#allocation2 + $0x588] sm:$0xff]
    %v201 = vld [vmem:[#allocation2 + $0x590] sm:$0xff]
    %v202 = vld [vmem:[#allocation2 + $0x598] sm:$0xff]
    %v203 = vld [vmem:[#allocation2 + $0x5a0] sm:$0xff]
    %v204 = vld [vmem:[#allocation2 + $0x5a8] sm:$0xff]
    %v205 = vld [vmem:[#allocation2 + $0x5b0] sm:$0xff]
    %v206 = vld [vmem:[#allocation2 + $0x5b8] sm:$0xff]
    %v207 = vld [vmem:[#allocation2 + $0x5c0] sm:$0xff]
    %v208 = vld [vmem:[#allocation2 + $0x5c8] sm:$0xff]
    %v209 = vld [vmem:[#allocation2 + $0x5d0] sm:$0xff]
    %v210 = vld [vmem:[#allocation2 + $0x5d8] sm:$0xff]
    %v211 = vld [vmem:[#allocation2 + $0x5e0] sm:$0xff]
    %v212 = vld [vmem:[#allocation2 + $0x5e8] sm:$0xff]
    %v213 = vld [vmem:[#allocation2 + $0x5f0] sm:$0xff]
    %v214 = vld [vmem:[#allocation2 + $0x5f8] sm:$0xff]
    %v215 = vld [vmem:[#allocation2 + $0x600] sm:$0xff]
    %v216 = vld [vmem:[#allocation2 + $0x608] sm:$0xff]
    %v217 = vld [vmem:[#allocation2 + $0x610] sm:$0xff]
    %v218 = vld [vmem:[#allocation2 + $0x618] sm:$0xff]
    %v219 = vld [vmem:[#allocation2 + $0x620] sm:$0xff]
    %v220 = vld [vmem:[#allocation2 + $0x628] sm:$0xff]
    %v221 = vld [vmem:[#allocation2 + $0x630] sm:$0xff]
    %v222 = vld [vmem:[#allocation2 + $0x638] sm:$0xff]
    %v223 = vld [vmem:[#allocation2 + $0x640] sm:$0xff]
    %v224 = vld [vmem:[#allocation2 + $0x648] sm:$0xff]
    %v225 = vld [vmem:[#allocation2 + $0x650] sm:$0xff]
    %v226 = vld [vmem:[#allocation2 + $0x658] sm:$0xff]
    %v227 = vld [vmem:[#allocation2 + $0x660] sm:$0xff]
    %v228 = vld [vmem:[#allocation2 + $0x668] sm:$0xff]
    %v229 = vld [vmem:[#allocation2 + $0x670] sm:$0xff]
    %v230 = vld [vmem:[#allocation2 + $0x678] sm:$0xff]
    %v231 = vld [vmem:[#allocation2 + $0x680] sm:$0xff]
    %v232 = vld [vmem:[#allocation2 + $0x688] sm:$0xff]
    %v233 = vld [vmem:[#allocation2 + $0x690] sm:$0xff]
    %v234 = vld [vmem:[#allocation2 + $0x698] sm:$0xff]
    %v235 = vld [vmem:[#allocation2 + $0x6a0] sm:$0xff]
    %v236 = vld [vmem:[#allocation2 + $0x6a8] sm:$0xff]
    %v237 = vld [vmem:[#allocation2 + $0x6b0] sm:$0xff]
    %v238 = vld [vmem:[#allocation2 + $0x6b8] sm:$0xff]
    %v239 = vld [vmem:[#allocation2 + $0x6c0] sm:$0xff]
    %v240 = vld [vmem:[#allocation2 + $0x6c8] sm:$0xff]
    %v241 = vld [vmem:[#allocation2 + $0x6d0] sm:$0xff]
    %v242 = vld [vmem:[#allocation2 + $0x6d8] sm:$0xff]
    %v243 = vld [vmem:[#allocation2 + $0x6e0] sm:$0xff]
    %v244 = vld [vmem:[#allocation2 + $0x6e8] sm:$0xff]
    %v245 = vld [vmem:[#allocation2 + $0x6f0] sm:$0xff]
    %v246 = vld [vmem:[#allocation2 + $0x6f8] sm:$0xff]
    %v247 = vld [vmem:[#allocation2 + $0x700] sm:$0xff]
    %v248 = vld [vmem:[#allocation2 + $0x708] sm:$0xff]
    %v249 = vld [vmem:[#allocation2 + $0x710] sm:$0xff]
    %v250 = vld [vmem:[#allocation2 + $0x718] sm:$0xff]
    %v251 = vld [vmem:[#allocation2 + $0x720] sm:$0xff]
    %v252 = vld [vmem:[#allocation2 + $0x728] sm:$0xff]
    %v253 = vld [vmem:[#allocation2 + $0x730] sm:$0xff]
    %v254 = vld [vmem:[#allocation2 + $0x738] sm:$0xff]
    %v255 = vld [vmem:[#allocation2 + $0x740] sm:$0xff]
    %v256 = vld [vmem:[#allocation2 + $0x748] sm:$0xff]
    %v257 = vld [vmem:[#allocation2 + $0x750] sm:$0xff]
    %v258 = vld [vmem:[#allocation2 + $0x758] sm:$0xff]
    %v259 = vld [vmem:[#allocation2 + $0x760] sm:$0xff]
    %v260 = vld [vmem:[#allocation2 + $0x768] sm:$0xff]
    %v261 = vld [vmem:[#allocation2 + $0x770] sm:$0xff]
    %v262 = vld [vmem:[#allocation2 + $0x778] sm:$0xff]
    %v263 = vld [vmem:[#allocation2 + $0x780] sm:$0xff]
    %v264 = vld [vmem:[#allocation2 + $0x788] sm:$0xff]
    %v265 = vld [vmem:[#allocation2 + $0x790] sm:$0xff]
    %v266 = vld [vmem:[#allocation2 + $0x798] sm:$0xff]
    %v267 = vld [vmem:[#allocation2 + $0x7a0] sm:$0xff]
    %v268 = vld [vmem:[#allocation2 + $0x7a8] sm:$0xff]
    %v269 = vld [vmem:[#allocation2 + $0x7b0] sm:$0xff]
    %v270 = vld [vmem:[#allocation2 + $0x7b8] sm:$0xff]
    %v271 = vld [vmem:[#allocation2 + $0x7c0] sm:$0xff]
    %v272 = vld [vmem:[#allocation2 + $0x7c8] sm:$0xff]
    %v273 = vld [vmem:[#allocation2 + $0x7d0] sm:$0xff]
    %v274 = vld [vmem:[#allocation2 + $0x7d8] sm:$0xff]
    %v275 = vld [vmem:[#allocation2 + $0x7e0] sm:$0xff]
    %v276 = vld [vmem:[#allocation2 + $0x7e8] sm:$0xff]
    %v277 = vld [vmem:[#allocation2 + $0x7f0] sm:$0xff]
    %v278 = vld [vmem:[#allocation2 + $0x7f8] sm:$0xff]
    %v279 = vld [vmem:[#allocation2 + $0x800] sm:$0xff]
    %v280 = vld [vmem:[#allocation2 + $0x808] sm:$0xff]
    %v281 = vld [vmem:[#allocation2 + $0x810] sm:$0xff]
    %v282 = vld [vmem:[#allocation2 + $0x818] sm:$0xff]
    %v283 = vld [vmem:[#allocation2 + $0x820] sm:$0xff]
    %v284 = vld [vmem:[#allocation2 + $0x828] sm:$0xff]
    %v285 = vld [vmem:[#allocation2 + $0x830] sm:$0xff]
    %v286 = vld [vmem:[#allocation2 + $0x838] sm:$0xff]
    %v287 = vld [vmem:[#allocation2 + $0x840] sm:$0xff]
    %v288 = vld [vmem:[#allocation2 + $0x848] sm:$0xff]
    %v289 = vld [vmem:[#allocation2 + $0x850] sm:$0xff]
    %v290 = vld [vmem:[#allocation2 + $0x858] sm:$0xff]
    %v291 = vld [vmem:[#allocation2 + $0x860] sm:$0xff]
    %v292 = vld [vmem:[#allocation2 + $0x868] sm:$0xff]
    %v293 = vld [vmem:[#allocation2 + $0x870] sm:$0xff]
    %v294 = vld [vmem:[#allocation2 + $0x878] sm:$0xff]
    %v295 = vld [vmem:[#allocation2 + $0x880] sm:$0xff]
    %v296 = vld [vmem:[#allocation2 + $0x888] sm:$0xff]
    %v297 = vld [vmem:[#allocation2 + $0x890] sm:$0xff]
    %v298 = vld [vmem:[#allocation2 + $0x898] sm:$0xff]
    %v299 = vld [vmem:[#allocation2 + $0x8a0] sm:$0xff]
    %v300 = vld [vmem:[#allocation2 + $0x8a8] sm:$0xff]
    %v301 = vld [vmem:[#allocation2 + $0x8b0] sm:$0xff]
    %v302 = vld [vmem:[#allocation2 + $0x8b8] sm:$0xff]
    %v303 = vld [vmem:[#allocation2 + $0x8c0] sm:$0xff]
    %v304 = vld [vmem:[#allocation2 + $0x8c8] sm:$0xff]
    %v305 = vld [vmem:[#allocation2 + $0x8d0] sm:$0xff]
    %v306 = vld [vmem:[#allocation2 + $0x8d8] sm:$0xff]
    %v307 = vld [vmem:[#allocation2 + $0x8e0] sm:$0xff]
    %v308 = vld [vmem:[#allocation2 + $0x8e8] sm:$0xff]
    %v309 = vld [vmem:[#allocation2 + $0x8f0] sm:$0xff]
    %v310 = vld [vmem:[#allocation2 + $0x8f8] sm:$0xff]
    %v311 = vld [vmem:[#allocation2 + $0x900] sm:$0xff]
    %v312 = vld [vmem:[#allocation2 + $0x908] sm:$0xff]
    %v313 = vld [vmem:[#allocation2 + $0x910] sm:$0xff]
    %v314 = vld [vmem:[#allocation2 + $0x918] sm:$0xff]
    %v315 = vld [vmem:[#allocation2 + $0x920] sm:$0xff]
    %v316 = vld [vmem:[#allocation2 + $0x928] sm:$0xff]
    %v317 = vld [vmem:[#allocation2 + $0x930] sm:$0xff]
    %v318 = vld [vmem:[#allocation2 + $0x938] sm:$0xff]
    %v319 = vld [vmem:[#allocation2 + $0x940] sm:$0xff]
    %v320 = vld [vmem:[#allocation2 + $0x948] sm:$0xff]
    %v321 = vld [vmem:[#allocation2 + $0x950] sm:$0xff]
    %v322 = vld [vmem:[#allocation2 + $0x958] sm:$0xff]
    %v323 = vld [vmem:[#allocation2 + $0x960] sm:$0xff]
    %v324 = vld [vmem:[#allocation2 + $0x968] sm:$0xff]
    %v325 = vld [vmem:[#allocation2 + $0x970] sm:$0xff]
    %v326 = vld [vmem:[#allocation2 + $0x978] sm:$0xff]
    %v327 = vld [vmem:[#allocation2 + $0x980] sm:$0xff]
    %v328 = vld [vmem:[#allocation2 + $0x988] sm:$0xff]
    %v329 = vld [vmem:[#allocation2 + $0x990] sm:$0xff]
    %v330 = vld [vmem:[#allocation2 + $0x998] sm:$0xff]
    %v331 = vld [vmem:[#allocation2 + $0x9a0] sm:$0xff]
    %v332 = vld [vmem:[#allocation2 + $0x9a8] sm:$0xff]
    %v333 = vld [vmem:[#allocation2 + $0x9b0] sm:$0xff]
    %v334 = vld [vmem:[#allocation2 + $0x9b8] sm:$0xff]
    %v335 = vld [vmem:[#allocation2 + $0x9c0] sm:$0xff]
    %v336 = vld [vmem:[#allocation2 + $0x9c8] sm:$0xff]
    %v337 = vld [vmem:[#allocation2 + $0x9d0] sm:$0xff]
    %v338 = vld [vmem:[#allocation2 + $0x9d8] sm:$0xff]
    %v339 = vld [vmem:[#allocation2 + $0x9e0] sm:$0xff]
    %v340 = vld [vmem:[#allocation2 + $0x9e8] sm:$0xff]
    %v341 = vld [vmem:[#allocation2 + $0x9f0] sm:$0xff]
    %v342 = vld [vmem:[#allocation2 + $0x9f8] sm:$0xff]
    %v343 = vld [vmem:[#allocation2 + $0xa00] sm:$0xff]
    %v344 = vld [vmem:[#allocation2 + $0xa08] sm:$0xff]
    %v345 = vld [vmem:[#allocation2 + $0xa10] sm:$0xff]
    %v346 = vld [vmem:[#allocation2 + $0xa18] sm:$0xff]
    %v347 = vld [vmem:[#allocation2 + $0xa20] sm:$0xff]
    %v348 = vld [vmem:[#allocation2 + $0xa28] sm:$0xff]
    %v349 = vld [vmem:[#allocation2 + $0xa30] sm:$0xff]
    %v350 = vld [vmem:[#allocation2 + $0xa38] sm:$0xff]
    %v351 = vld [vmem:[#allocation2 + $0xa40] sm:$0xff]
    %v352 = vld [vmem:[#allocation2 + $0xa48] sm:$0xff]
    %v353 = vld [vmem:[#allocation2 + $0xa50] sm:$0xff]
    %v354 = vld [vmem:[#allocation2 + $0xa58] sm:$0xff]
    %v355 = vld [vmem:[#allocation2 + $0xa60] sm:$0xff]
    %v356 = vld [vmem:[#allocation2 + $0xa68] sm:$0xff]
    %v357 = vld [vmem:[#allocation2 + $0xa70] sm:$0xff]
    %v358 = vld [vmem:[#allocation2 + $0xa78] sm:$0xff]
    %v359 = vld [vmem:[#allocation2 + $0xa80] sm:$0xff]
    %v360 = vld [vmem:[#allocation2 + $0xa88] sm:$0xff]
    %v361 = vld [vmem:[#allocation2 + $0xa90] sm:$0xff]
    %v362 = vld [vmem:[#allocation2 + $0xa98] sm:$0xff]
    %v363 = vld [vmem:[#allocation2 + $0xaa0] sm:$0xff]
    %v364 = vld [vmem:[#allocation2 + $0xaa8] sm:$0xff]
    %v365 = vld [vmem:[#allocation2 + $0xab0] sm:$0xff]
    %v366 = vld [vmem:[#allocation2 + $0xab8] sm:$0xff]
    %v367 = vld [vmem:[#allocation2 + $0xac0] sm:$0xff]
    %v368 = vld [vmem:[#allocation2 + $0xac8] sm:$0xff]
    %v369 = vld [vmem:[#allocation2 + $0xad0] sm:$0xff]
    %v370 = vld [vmem:[#allocation2 + $0xad8] sm:$0xff]
    %v371 = vld [vmem:[#allocation2 + $0xae0] sm:$0xff]
    %v372 = vld [vmem:[#allocation2 + $0xae8] sm:$0xff]
    %v373 = vld [vmem:[#allocation2 + $0xaf0] sm:$0xff]
    %v374 = vld [vmem:[#allocation2 + $0xaf8] sm:$0xff]
    %v375 = vld [vmem:[#allocation2 + $0xb00] sm:$0xff]
    %v376 = vld [vmem:[#allocation2 + $0xb08] sm:$0xff]
    %v377 = vld [vmem:[#allocation2 + $0xb10] sm:$0xff]
    %v378 = vld [vmem:[#allocation2 + $0xb18] sm:$0xff]
    %v379 = vld [vmem:[#allocation2 + $0xb20] sm:$0xff]
    %v380 = vld [vmem:[#allocation2 + $0xb28] sm:$0xff]
    %v381 = vld [vmem:[#allocation2 + $0xb30] sm:$0xff]
    %v382 = vld [vmem:[#allocation2 + $0xb38] sm:$0xff]
    %v383 = vld [vmem:[#allocation2 + $0xb40] sm:$0xff]
    %v384 = vld [vmem:[#allocation2 + $0xb48] sm:$0xff]
    %v385 = vld [vmem:[#allocation2 + $0xb50] sm:$0xff]
    %v386 = vld [vmem:[#allocation2 + $0xb58] sm:$0xff]
    %v387 = vld [vmem:[#allocation2 + $0xb60] sm:$0xff]
    %v388 = vld [vmem:[#allocation2 + $0xb68] sm:$0xff]
    %v389 = vld [vmem:[#allocation2 + $0xb70] sm:$0xff]
    %v390 = vld [vmem:[#allocation2 + $0xb78] sm:$0xff]
    %v391 = vld [vmem:[#allocation2 + $0xb80] sm:$0xff]
    %v392 = vld [vmem:[#allocation2 + $0xb88] sm:$0xff]
    %v393 = vld [vmem:[#allocation2 + $0xb90] sm:$0xff]
    %v394 = vld [vmem:[#allocation2 + $0xb98] sm:$0xff]
    %v395 = vld [vmem:[#allocation2 + $0xba0] sm:$0xff]
    %v396 = vld [vmem:[#allocation2 + $0xba8] sm:$0xff]
    %v397 = vld [vmem:[#allocation2 + $0xbb0] sm:$0xff]
    %v398 = vld [vmem:[#allocation2 + $0xbb8] sm:$0xff]
    %v399 = vld [vmem:[#allocation2 + $0xbc0] sm:$0xff]
    %v400 = vld [vmem:[#allocation2 + $0xbc8] sm:$0xff]
    %v401 = vld [vmem:[#allocation2 + $0xbd0] sm:$0xff]
    %v402 = vld [vmem:[#allocation2 + $0xbd8] sm:$0xff]
    %v403 = vld [vmem:[#allocation2 + $0xbe0] sm:$0xff]
    %v404 = vld [vmem:[#allocation2 + $0xbe8] sm:$0xff]
    %v405 = vld [vmem:[#allocation2 + $0xbf0] sm:$0xff]
    %v406 = vld [vmem:[#allocation2 + $0xbf8] sm:$0xff]
    %407 = vxpose.xlu0.b32.start [1/16] %v23, 128
    %408 = vxpose.xlu0.b32.cont [2/16] %v27, 128
    %409 = vxpose.xlu0.b32.cont [3/16] %v31, 128
    %410 = vxpose.xlu0.b32.cont [4/16] %v35, 128
    %411 = vxpose.xlu0.b32.cont [5/16] %v39, 128
    %412 = vxpose.xlu0.b32.cont [6/16] %v43, 128
    %413 = vxpose.xlu0.b32.cont [7/16] %v47, 128
    %414 = vxpose.xlu0.b32.cont [8/16] %v51, 128
    %415 = vxpose.xlu0.b32.cont [9/16] %v55, 128
    %416 = vxpose.xlu0.b32.cont [10/16] %v59, 128
    %417 = vxpose.xlu0.b32.cont [11/16] %v63, 128
    %418 = vxpose.xlu0.b32.cont [12/16] %v67, 128
    %419 = vxpose.xlu0.b32.cont [13/16] %v71, 128
    %420 = vxpose.xlu0.b32.cont [14/16] %v75, 128
    %421 = vxpose.xlu0.b32.cont [15/16] %v79, 128
    %422 = vxpose.xlu0.b32.end [16/16] %v83, 128
    %v423 = vpop.trf.xlu0
    %v424 = vpop.trf.xlu0
    %v425 = vpop.trf.xlu0
    %v426 = vpop.trf.xlu0
    %v427 = vpop.trf.xlu0
    %v428 = vpop.trf.xlu0
    %v429 = vpop.trf.xlu0
    %v430 = vpop.trf.xlu0
    %v431 = vpop.trf.xlu0
    %v432 = vpop.trf.xlu0
    %v433 = vpop.trf.xlu0
    %v434 = vpop.trf.xlu0
    %v435 = vpop.trf.xlu0
    %v436 = vpop.trf.xlu0
    %v437 = vpop.trf.xlu0
    %v438 = vpop.trf.xlu0
    %439 = vxpose.xlu0.b32.start [1/16] %v24, 128
    %440 = vxpose.xlu0.b32.cont [2/16] %v28, 128
    %441 = vxpose.xlu0.b32.cont [3/16] %v32, 128
    %442 = vxpose.xlu0.b32.cont [4/16] %v36, 128
    %443 = vxpose.xlu0.b32.cont [5/16] %v40, 128
    %444 = vxpose.xlu0.b32.cont [6/16] %v44, 128
    %445 = vxpose.xlu0.b32.cont [7/16] %v48, 128
    %446 = vxpose.xlu0.b32.cont [8/16] %v52, 128
    %447 = vxpose.xlu0.b32.cont [9/16] %v56, 128
    %448 = vxpose.xlu0.b32.cont [10/16] %v60, 128
    %449 = vxpose.xlu0.b32.cont [11/16] %v64, 128
    %450 = vxpose.xlu0.b32.cont [12/16] %v68, 128
    %451 = vxpose.xlu0.b32.cont [13/16] %v72, 128
    %452 = vxpose.xlu0.b32.cont [14/16] %v76, 128
    %453 = vxpose.xlu0.b32.cont [15/16] %v80, 128
    %454 = vxpose.xlu0.b32.end [16/16] %v84, 128
    %v455 = vpop.trf.xlu0
    %v456 = vpop.trf.xlu0
    %v457 = vpop.trf.xlu0
    %v458 = vpop.trf.xlu0
    %v459 = vpop.trf.xlu0
    %v460 = vpop.trf.xlu0
    %v461 = vpop.trf.xlu0
    %v462 = vpop.trf.xlu0
    %v463 = vpop.trf.xlu0
    %v464 = vpop.trf.xlu0
    %v465 = vpop.trf.xlu0
    %v466 = vpop.trf.xlu0
    %v467 = vpop.trf.xlu0
    %v468 = vpop.trf.xlu0
    %v469 = vpop.trf.xlu0
    %v470 = vpop.trf.xlu0
    %471 = vxpose.xlu0.b32.start [1/16] %v25, 128
    %472 = vxpose.xlu0.b32.cont [2/16] %v29, 128
    %473 = vxpose.xlu0.b32.cont [3/16] %v33, 128
    %474 = vxpose.xlu0.b32.cont [4/16] %v37, 128
    %475 = vxpose.xlu0.b32.cont [5/16] %v41, 128
    %476 = vxpose.xlu0.b32.cont [6/16] %v45, 128
    %477 = vxpose.xlu0.b32.cont [7/16] %v49, 128
    %478 = vxpose.xlu0.b32.cont [8/16] %v53, 128
    %479 = vxpose.xlu0.b32.cont [9/16] %v57, 128
    %480 = vxpose.xlu0.b32.cont [10/16] %v61, 128
    %481 = vxpose.xlu0.b32.cont [11/16] %v65, 128
    %482 = vxpose.xlu0.b32.cont [12/16] %v69, 128
    %483 = vxpose.xlu0.b32.cont [13/16] %v73, 128
    %484 = vxpose.xlu0.b32.cont [14/16] %v77, 128
    %485 = vxpose.xlu0.b32.cont [15/16] %v81, 128
    %486 = vxpose.xlu0.b32.end [16/16] %v85, 128
    %v487 = vpop.trf.xlu0
    %v488 = vpop.trf.xlu0
    %v489 = vpop.trf.xlu0
    %v490 = vpop.trf.xlu0
    %v491 = vpop.trf.xlu0
    %v492 = vpop.trf.xlu0
    %v493 = vpop.trf.xlu0
    %v494 = vpop.trf.xlu0
    %v495 = vpop.trf.xlu0
    %v496 = vpop.trf.xlu0
    %v497 = vpop.trf.xlu0
    %v498 = vpop.trf.xlu0
    %v499 = vpop.trf.xlu0
    %v500 = vpop.trf.xlu0
    %v501 = vpop.trf.xlu0
    %v502 = vpop.trf.xlu0
    %503 = vxpose.xlu0.b32.start [1/16] %v26, 128
    %504 = vxpose.xlu0.b32.cont [2/16] %v30, 128
    %505 = vxpose.xlu0.b32.cont [3/16] %v34, 128
    %506 = vxpose.xlu0.b32.cont [4/16] %v38, 128
    %507 = vxpose.xlu0.b32.cont [5/16] %v42, 128
    %508 = vxpose.xlu0.b32.cont [6/16] %v46, 128
    %509 = vxpose.xlu0.b32.cont [7/16] %v50, 128
    %510 = vxpose.xlu0.b32.cont [8/16] %v54, 128
    %511 = vxpose.xlu0.b32.cont [9/16] %v58, 128
    %512 = vxpose.xlu0.b32.cont [10/16] %v62, 128
    %513 = vxpose.xlu0.b32.cont [11/16] %v66, 128
    %514 = vxpose.xlu0.b32.cont [12/16] %v70, 128
    %515 = vxpose.xlu0.b32.cont [13/16] %v74, 128
    %516 = vxpose.xlu0.b32.cont [14/16] %v78, 128
    %517 = vxpose.xlu0.b32.cont [15/16] %v82, 128
    %518 = vxpose.xlu0.b32.end [16/16] %v86, 128
    %v519 = vpop.trf.xlu0
    %v520 = vpop.trf.xlu0
    %v521 = vpop.trf.xlu0
    %v522 = vpop.trf.xlu0
    %v523 = vpop.trf.xlu0
    %v524 = vpop.trf.xlu0
    %v525 = vpop.trf.xlu0
    %v526 = vpop.trf.xlu0
    %v527 = vpop.trf.xlu0
    %v528 = vpop.trf.xlu0
    %v529 = vpop.trf.xlu0
    %v530 = vpop.trf.xlu0
    %v531 = vpop.trf.xlu0
    %v532 = vpop.trf.xlu0
    %v533 = vpop.trf.xlu0
    %v534 = vpop.trf.xlu0
    %535 = vxpose.xlu0.b32.start [1/16] %v87, 128
    %536 = vxpose.xlu0.b32.cont [2/16] %v91, 128
    %537 = vxpose.xlu0.b32.cont [3/16] %v95, 128
    %538 = vxpose.xlu0.b32.cont [4/16] %v99, 128
    %539 = vxpose.xlu0.b32.cont [5/16] %v103, 128
    %540 = vxpose.xlu0.b32.cont [6/16] %v107, 128
    %541 = vxpose.xlu0.b32.cont [7/16] %v111, 128
    %542 = vxpose.xlu0.b32.cont [8/16] %v115, 128
    %543 = vxpose.xlu0.b32.cont [9/16] %v119, 128
    %544 = vxpose.xlu0.b32.cont [10/16] %v123, 128
    %545 = vxpose.xlu0.b32.cont [11/16] %v127, 128
    %546 = vxpose.xlu0.b32.cont [12/16] %v131, 128
    %547 = vxpose.xlu0.b32.cont [13/16] %v135, 128
    %548 = vxpose.xlu0.b32.cont [14/16] %v139, 128
    %549 = vxpose.xlu0.b32.cont [15/16] %v143, 128
    %550 = vxpose.xlu0.b32.end [16/16] %v147, 128
    %v551 = vpop.trf.xlu0
    %v552 = vpop.trf.xlu0
    %v553 = vpop.trf.xlu0
    %v554 = vpop.trf.xlu0
    %v555 = vpop.trf.xlu0
    %v556 = vpop.trf.xlu0
    %v557 = vpop.trf.xlu0
    %v558 = vpop.trf.xlu0
    %v559 = vpop.trf.xlu0
    %v560 = vpop.trf.xlu0
    %v561 = vpop.trf.xlu0
    %v562 = vpop.trf.xlu0
    %v563 = vpop.trf.xlu0
    %v564 = vpop.trf.xlu0
    %v565 = vpop.trf.xlu0
    %v566 = vpop.trf.xlu0
    %567 = vxpose.xlu0.b32.start [1/16] %v88, 128
    %568 = vxpose.xlu0.b32.cont [2/16] %v92, 128
    %569 = vxpose.xlu0.b32.cont [3/16] %v96, 128
    %570 = vxpose.xlu0.b32.cont [4/16] %v100, 128
    %571 = vxpose.xlu0.b32.cont [5/16] %v104, 128
    %572 = vxpose.xlu0.b32.cont [6/16] %v108, 128
    %573 = vxpose.xlu0.b32.cont [7/16] %v112, 128
    %574 = vxpose.xlu0.b32.cont [8/16] %v116, 128
    %575 = vxpose.xlu0.b32.cont [9/16] %v120, 128
    %576 = vxpose.xlu0.b32.cont [10/16] %v124, 128
    %577 = vxpose.xlu0.b32.cont [11/16] %v128, 128
    %578 = vxpose.xlu0.b32.cont [12/16] %v132, 128
    %579 = vxpose.xlu0.b32.cont [13/16] %v136, 128
    %580 = vxpose.xlu0.b32.cont [14/16] %v140, 128
    %581 = vxpose.xlu0.b32.cont [15/16] %v144, 128
    %582 = vxpose.xlu0.b32.end [16/16] %v148, 128
    %v583 = vpop.trf.xlu0
    %v584 = vpop.trf.xlu0
    %v585 = vpop.trf.xlu0
    %v586 = vpop.trf.xlu0
    %v587 = vpop.trf.xlu0
    %v588 = vpop.trf.xlu0
    %v589 = vpop.trf.xlu0
    %v590 = vpop.trf.xlu0
    %v591 = vpop.trf.xlu0
    %v592 = vpop.trf.xlu0
    %v593 = vpop.trf.xlu0
    %v594 = vpop.trf.xlu0
    %v595 = vpop.trf.xlu0
    %v596 = vpop.trf.xlu0
    %v597 = vpop.trf.xlu0
    %v598 = vpop.trf.xlu0
    %599 = vxpose.xlu0.b32.start [1/16] %v89, 128
    %600 = vxpose.xlu0.b32.cont [2/16] %v93, 128
    %601 = vxpose.xlu0.b32.cont [3/16] %v97, 128
    %602 = vxpose.xlu0.b32.cont [4/16] %v101, 128
    %603 = vxpose.xlu0.b32.cont [5/16] %v105, 128
    %604 = vxpose.xlu0.b32.cont [6/16] %v109, 128
    %605 = vxpose.xlu0.b32.cont [7/16] %v113, 128
    %606 = vxpose.xlu0.b32.cont [8/16] %v117, 128
    %607 = vxpose.xlu0.b32.cont [9/16] %v121, 128
    %608 = vxpose.xlu0.b32.cont [10/16] %v125, 128
    %609 = vxpose.xlu0.b32.cont [11/16] %v129, 128
    %610 = vxpose.xlu0.b32.cont [12/16] %v133, 128
    %611 = vxpose.xlu0.b32.cont [13/16] %v137, 128
    %612 = vxpose.xlu0.b32.cont [14/16] %v141, 128
    %613 = vxpose.xlu0.b32.cont [15/16] %v145, 128
    %614 = vxpose.xlu0.b32.end [16/16] %v149, 128
    %v615 = vpop.trf.xlu0
    %v616 = vpop.trf.xlu0
    %v617 = vpop.trf.xlu0
    %v618 = vpop.trf.xlu0
    %v619 = vpop.trf.xlu0
    %v620 = vpop.trf.xlu0
    %v621 = vpop.trf.xlu0
    %v622 = vpop.trf.xlu0
    %v623 = vpop.trf.xlu0
    %v624 = vpop.trf.xlu0
    %v625 = vpop.trf.xlu0
    %v626 = vpop.trf.xlu0
    %v627 = vpop.trf.xlu0
    %v628 = vpop.trf.xlu0
    %v629 = vpop.trf.xlu0
    %v630 = vpop.trf.xlu0
    %631 = vxpose.xlu0.b32.start [1/16] %v90, 128
    %632 = vxpose.xlu0.b32.cont [2/16] %v94, 128
    %633 = vxpose.xlu0.b32.cont [3/16] %v98, 128
    %634 = vxpose.xlu0.b32.cont [4/16] %v102, 128
    %635 = vxpose.xlu0.b32.cont [5/16] %v106, 128
    %636 = vxpose.xlu0.b32.cont [6/16] %v110, 128
    %637 = vxpose.xlu0.b32.cont [7/16] %v114, 128
    %638 = vxpose.xlu0.b32.cont [8/16] %v118, 128
    %639 = vxpose.xlu0.b32.cont [9/16] %v122, 128
    %640 = vxpose.xlu0.b32.cont [10/16] %v126, 128
    %641 = vxpose.xlu0.b32.cont [11/16] %v130, 128
    %642 = vxpose.xlu0.b32.cont [12/16] %v134, 128
    %643 = vxpose.xlu0.b32.cont [13/16] %v138, 128
    %644 = vxpose.xlu0.b32.cont [14/16] %v142, 128
    %645 = vxpose.xlu0.b32.cont [15/16] %v146, 128
    %646 = vxpose.xlu0.b32.end [16/16] %v150, 128
    %v647 = vpop.trf.xlu0
    %v648 = vpop.trf.xlu0
    %v649 = vpop.trf.xlu0
    %v650 = vpop.trf.xlu0
    %v651 = vpop.trf.xlu0
    %v652 = vpop.trf.xlu0
    %v653 = vpop.trf.xlu0
    %v654 = vpop.trf.xlu0
    %v655 = vpop.trf.xlu0
    %v656 = vpop.trf.xlu0
    %v657 = vpop.trf.xlu0
    %v658 = vpop.trf.xlu0
    %v659 = vpop.trf.xlu0
    %v660 = vpop.trf.xlu0
    %v661 = vpop.trf.xlu0
    %v662 = vpop.trf.xlu0
    %663 = vxpose.xlu0.b32.start [1/16] %v151, 128
    %664 = vxpose.xlu0.b32.cont [2/16] %v155, 128
    %665 = vxpose.xlu0.b32.cont [3/16] %v159, 128
    %666 = vxpose.xlu0.b32.cont [4/16] %v163, 128
    %667 = vxpose.xlu0.b32.cont [5/16] %v167, 128
    %668 = vxpose.xlu0.b32.cont [6/16] %v171, 128
    %669 = vxpose.xlu0.b32.cont [7/16] %v175, 128
    %670 = vxpose.xlu0.b32.cont [8/16] %v179, 128
    %671 = vxpose.xlu0.b32.cont [9/16] %v183, 128
    %672 = vxpose.xlu0.b32.cont [10/16] %v187, 128
    %673 = vxpose.xlu0.b32.cont [11/16] %v191, 128
    %674 = vxpose.xlu0.b32.cont [12/16] %v195, 128
    %675 = vxpose.xlu0.b32.cont [13/16] %v199, 128
    %676 = vxpose.xlu0.b32.cont [14/16] %v203, 128
    %677 = vxpose.xlu0.b32.cont [15/16] %v207, 128
    %678 = vxpose.xlu0.b32.end [16/16] %v211, 128
    %v679 = vpop.trf.xlu0
    %v680 = vpop.trf.xlu0
    %v681 = vpop.trf.xlu0
    %v682 = vpop.trf.xlu0
    %v683 = vpop.trf.xlu0
    %v684 = vpop.trf.xlu0
    %v685 = vpop.trf.xlu0
    %v686 = vpop.trf.xlu0
    %v687 = vpop.trf.xlu0
    %v688 = vpop.trf.xlu0
    %v689 = vpop.trf.xlu0
    %v690 = vpop.trf.xlu0
    %v691 = vpop.trf.xlu0
    %v692 = vpop.trf.xlu0
    %v693 = vpop.trf.xlu0
    %v694 = vpop.trf.xlu0
    %695 = vxpose.xlu0.b32.start [1/16] %v152, 128
    %696 = vxpose.xlu0.b32.cont [2/16] %v156, 128
    %697 = vxpose.xlu0.b32.cont [3/16] %v160, 128
    %698 = vxpose.xlu0.b32.cont [4/16] %v164, 128
    %699 = vxpose.xlu0.b32.cont [5/16] %v168, 128
    %700 = vxpose.xlu0.b32.cont [6/16] %v172, 128
    %701 = vxpose.xlu0.b32.cont [7/16] %v176, 128
    %702 = vxpose.xlu0.b32.cont [8/16] %v180, 128
    %703 = vxpose.xlu0.b32.cont [9/16] %v184, 128
    %704 = vxpose.xlu0.b32.cont [10/16] %v188, 128
    %705 = vxpose.xlu0.b32.cont [11/16] %v192, 128
    %706 = vxpose.xlu0.b32.cont [12/16] %v196, 128
    %707 = vxpose.xlu0.b32.cont [13/16] %v200, 128
    %708 = vxpose.xlu0.b32.cont [14/16] %v204, 128
    %709 = vxpose.xlu0.b32.cont [15/16] %v208, 128
    %710 = vxpose.xlu0.b32.end [16/16] %v212, 128
    %v711 = vpop.trf.xlu0
    %v712 = vpop.trf.xlu0
    %v713 = vpop.trf.xlu0
    %v714 = vpop.trf.xlu0
    %v715 = vpop.trf.xlu0
    %v716 = vpop.trf.xlu0
    %v717 = vpop.trf.xlu0
    %v718 = vpop.trf.xlu0
    %v719 = vpop.trf.xlu0
    %v720 = vpop.trf.xlu0
    %v721 = vpop.trf.xlu0
    %v722 = vpop.trf.xlu0
    %v723 = vpop.trf.xlu0
    %v724 = vpop.trf.xlu0
    %v725 = vpop.trf.xlu0
    %v726 = vpop.trf.xlu0
    %727 = vxpose.xlu0.b32.start [1/16] %v153, 128
    %728 = vxpose.xlu0.b32.cont [2/16] %v157, 128
    %729 = vxpose.xlu0.b32.cont [3/16] %v161, 128
    %730 = vxpose.xlu0.b32.cont [4/16] %v165, 128
    %731 = vxpose.xlu0.b32.cont [5/16] %v169, 128
    %732 = vxpose.xlu0.b32.cont [6/16] %v173, 128
    %733 = vxpose.xlu0.b32.cont [7/16] %v177, 128
    %734 = vxpose.xlu0.b32.cont [8/16] %v181, 128
    %735 = vxpose.xlu0.b32.cont [9/16] %v185, 128
    %736 = vxpose.xlu0.b32.cont [10/16] %v189, 128
    %737 = vxpose.xlu0.b32.cont [11/16] %v193, 128
    %738 = vxpose.xlu0.b32.cont [12/16] %v197, 128
    %739 = vxpose.xlu0.b32.cont [13/16] %v201, 128
    %740 = vxpose.xlu0.b32.cont [14/16] %v205, 128
    %741 = vxpose.xlu0.b32.cont [15/16] %v209, 128
    %742 = vxpose.xlu0.b32.end [16/16] %v213, 128
    %v743 = vpop.trf.xlu0
    %v744 = vpop.trf.xlu0
    %v745 = vpop.trf.xlu0
    %v746 = vpop.trf.xlu0
    %v747 = vpop.trf.xlu0
    %v748 = vpop.trf.xlu0
    %v749 = vpop.trf.xlu0
    %v750 = vpop.trf.xlu0
    %v751 = vpop.trf.xlu0
    %v752 = vpop.trf.xlu0
    %v753 = vpop.trf.xlu0
    %v754 = vpop.trf.xlu0
    %v755 = vpop.trf.xlu0
    %v756 = vpop.trf.xlu0
    %v757 = vpop.trf.xlu0
    %v758 = vpop.trf.xlu0
    %759 = vxpose.xlu0.b32.start [1/16] %v154, 128
    %760 = vxpose.xlu0.b32.cont [2/16] %v158, 128
    %761 = vxpose.xlu0.b32.cont [3/16] %v162, 128
    %762 = vxpose.xlu0.b32.cont [4/16] %v166, 128
    %763 = vxpose.xlu0.b32.cont [5/16] %v170, 128
    %764 = vxpose.xlu0.b32.cont [6/16] %v174, 128
    %765 = vxpose.xlu0.b32.cont [7/16] %v178, 128
    %766 = vxpose.xlu0.b32.cont [8/16] %v182, 128
    %767 = vxpose.xlu0.b32.cont [9/16] %v186, 128
    %768 = vxpose.xlu0.b32.cont [10/16] %v190, 128
    %769 = vxpose.xlu0.b32.cont [11/16] %v194, 128
    %770 = vxpose.xlu0.b32.cont [12/16] %v198, 128
    %771 = vxpose.xlu0.b32.cont [13/16] %v202, 128
    %772 = vxpose.xlu0.b32.cont [14/16] %v206, 128
    %773 = vxpose.xlu0.b32.cont [15/16] %v210, 128
    %774 = vxpose.xlu0.b32.end [16/16] %v214, 128
    %v775 = vpop.trf.xlu0
    %v776 = vpop.trf.xlu0
    %v777 = vpop.trf.xlu0
    %v778 = vpop.trf.xlu0
    %v779 = vpop.trf.xlu0
    %v780 = vpop.trf.xlu0
    %v781 = vpop.trf.xlu0
    %v782 = vpop.trf.xlu0
    %v783 = vpop.trf.xlu0
    %v784 = vpop.trf.xlu0
    %v785 = vpop.trf.xlu0
    %v786 = vpop.trf.xlu0
    %v787 = vpop.trf.xlu0
    %v788 = vpop.trf.xlu0
    %v789 = vpop.trf.xlu0
    %v790 = vpop.trf.xlu0
    %791 = vxpose.xlu0.b32.start [1/16] %v215, 128
    %792 = vxpose.xlu0.b32.cont [2/16] %v219, 128
    %793 = vxpose.xlu0.b32.cont [3/16] %v223, 128
    %794 = vxpose.xlu0.b32.cont [4/16] %v227, 128
    %795 = vxpose.xlu0.b32.cont [5/16] %v231, 128
    %796 = vxpose.xlu0.b32.cont [6/16] %v235, 128
    %797 = vxpose.xlu0.b32.cont [7/16] %v239, 128
    %798 = vxpose.xlu0.b32.cont [8/16] %v243, 128
    %799 = vxpose.xlu0.b32.cont [9/16] %v247, 128
    %800 = vxpose.xlu0.b32.cont [10/16] %v251, 128
    %801 = vxpose.xlu0.b32.cont [11/16] %v255, 128
    %802 = vxpose.xlu0.b32.cont [12/16] %v259, 128
    %803 = vxpose.xlu0.b32.cont [13/16] %v263, 128
    %804 = vxpose.xlu0.b32.cont [14/16] %v267, 128
    %805 = vxpose.xlu0.b32.cont [15/16] %v271, 128
    %806 = vxpose.xlu0.b32.end [16/16] %v275, 128
    %v807 = vpop.trf.xlu0
    %v808 = vpop.trf.xlu0
    %v809 = vpop.trf.xlu0
    %v810 = vpop.trf.xlu0
    %v811 = vpop.trf.xlu0
    %v812 = vpop.trf.xlu0
    %v813 = vpop.trf.xlu0
    %v814 = vpop.trf.xlu0
    %v815 = vpop.trf.xlu0
    %v816 = vpop.trf.xlu0
    %v817 = vpop.trf.xlu0
    %v818 = vpop.trf.xlu0
    %v819 = vpop.trf.xlu0
    %v820 = vpop.trf.xlu0
    %v821 = vpop.trf.xlu0
    %v822 = vpop.trf.xlu0
    %823 = vxpose.xlu0.b32.start [1/16] %v216, 128
    %824 = vxpose.xlu0.b32.cont [2/16] %v220, 128
    %825 = vxpose.xlu0.b32.cont [3/16] %v224, 128
    %826 = vxpose.xlu0.b32.cont [4/16] %v228, 128
    %827 = vxpose.xlu0.b32.cont [5/16] %v232, 128
    %828 = vxpose.xlu0.b32.cont [6/16] %v236, 128
    %829 = vxpose.xlu0.b32.cont [7/16] %v240, 128
    %830 = vxpose.xlu0.b32.cont [8/16] %v244, 128
    %831 = vxpose.xlu0.b32.cont [9/16] %v248, 128
    %832 = vxpose.xlu0.b32.cont [10/16] %v252, 128
    %833 = vxpose.xlu0.b32.cont [11/16] %v256, 128
    %834 = vxpose.xlu0.b32.cont [12/16] %v260, 128
    %835 = vxpose.xlu0.b32.cont [13/16] %v264, 128
    %836 = vxpose.xlu0.b32.cont [14/16] %v268, 128
    %837 = vxpose.xlu0.b32.cont [15/16] %v272, 128
    %838 = vxpose.xlu0.b32.end [16/16] %v276, 128
    %v839 = vpop.trf.xlu0
    %v840 = vpop.trf.xlu0
    %v841 = vpop.trf.xlu0
    %v842 = vpop.trf.xlu0
    %v843 = vpop.trf.xlu0
    %v844 = vpop.trf.xlu0
    %v845 = vpop.trf.xlu0
    %v846 = vpop.trf.xlu0
    %v847 = vpop.trf.xlu0
    %v848 = vpop.trf.xlu0
    %v849 = vpop.trf.xlu0
    %v850 = vpop.trf.xlu0
    %v851 = vpop.trf.xlu0
    %v852 = vpop.trf.xlu0
    %v853 = vpop.trf.xlu0
    %v854 = vpop.trf.xlu0
    %855 = vxpose.xlu0.b32.start [1/16] %v217, 128
    %856 = vxpose.xlu0.b32.cont [2/16] %v221, 128
    %857 = vxpose.xlu0.b32.cont [3/16] %v225, 128
    %858 = vxpose.xlu0.b32.cont [4/16] %v229, 128
    %859 = vxpose.xlu0.b32.cont [5/16] %v233, 128
    %860 = vxpose.xlu0.b32.cont [6/16] %v237, 128
    %861 = vxpose.xlu0.b32.cont [7/16] %v241, 128
    %862 = vxpose.xlu0.b32.cont [8/16] %v245, 128
    %863 = vxpose.xlu0.b32.cont [9/16] %v249, 128
    %864 = vxpose.xlu0.b32.cont [10/16] %v253, 128
    %865 = vxpose.xlu0.b32.cont [11/16] %v257, 128
    %866 = vxpose.xlu0.b32.cont [12/16] %v261, 128
    %867 = vxpose.xlu0.b32.cont [13/16] %v265, 128
    %868 = vxpose.xlu0.b32.cont [14/16] %v269, 128
    %869 = vxpose.xlu0.b32.cont [15/16] %v273, 128
    %870 = vxpose.xlu0.b32.end [16/16] %v277, 128
    %v871 = vpop.trf.xlu0
    %v872 = vpop.trf.xlu0
    %v873 = vpop.trf.xlu0
    %v874 = vpop.trf.xlu0
    %v875 = vpop.trf.xlu0
    %v876 = vpop.trf.xlu0
    %v877 = vpop.trf.xlu0
    %v878 = vpop.trf.xlu0
    %v879 = vpop.trf.xlu0
    %v880 = vpop.trf.xlu0
    %v881 = vpop.trf.xlu0
    %v882 = vpop.trf.xlu0
    %v883 = vpop.trf.xlu0
    %v884 = vpop.trf.xlu0
    %v885 = vpop.trf.xlu0
    %v886 = vpop.trf.xlu0
    %887 = vxpose.xlu0.b32.start [1/16] %v218, 128
    %888 = vxpose.xlu0.b32.cont [2/16] %v222, 128
    %889 = vxpose.xlu0.b32.cont [3/16] %v226, 128
    %890 = vxpose.xlu0.b32.cont [4/16] %v230, 128
    %891 = vxpose.xlu0.b32.cont [5/16] %v234, 128
    %892 = vxpose.xlu0.b32.cont [6/16] %v238, 128
    %893 = vxpose.xlu0.b32.cont [7/16] %v242, 128
    %894 = vxpose.xlu0.b32.cont [8/16] %v246, 128
    %895 = vxpose.xlu0.b32.cont [9/16] %v250, 128
    %896 = vxpose.xlu0.b32.cont [10/16] %v254, 128
    %897 = vxpose.xlu0.b32.cont [11/16] %v258, 128
    %898 = vxpose.xlu0.b32.cont [12/16] %v262, 128
    %899 = vxpose.xlu0.b32.cont [13/16] %v266, 128
    %900 = vxpose.xlu0.b32.cont [14/16] %v270, 128
    %901 = vxpose.xlu0.b32.cont [15/16] %v274, 128
    %902 = vxpose.xlu0.b32.end [16/16] %v278, 128
    %v903 = vpop.trf.xlu0
    %v904 = vpop.trf.xlu0
    %v905 = vpop.trf.xlu0
    %v906 = vpop.trf.xlu0
    %v907 = vpop.trf.xlu0
    %v908 = vpop.trf.xlu0
    %v909 = vpop.trf.xlu0
    %v910 = vpop.trf.xlu0
    %v911 = vpop.trf.xlu0
    %v912 = vpop.trf.xlu0
    %v913 = vpop.trf.xlu0
    %v914 = vpop.trf.xlu0
    %v915 = vpop.trf.xlu0
    %v916 = vpop.trf.xlu0
    %v917 = vpop.trf.xlu0
    %v918 = vpop.trf.xlu0
    %919 = vxpose.xlu0.b32.start [1/16] %v279, 128
    %920 = vxpose.xlu0.b32.cont [2/16] %v283, 128
    %921 = vxpose.xlu0.b32.cont [3/16] %v287, 128
    %922 = vxpose.xlu0.b32.cont [4/16] %v291, 128
    %923 = vxpose.xlu0.b32.cont [5/16] %v295, 128
    %924 = vxpose.xlu0.b32.cont [6/16] %v299, 128
    %925 = vxpose.xlu0.b32.cont [7/16] %v303, 128
    %926 = vxpose.xlu0.b32.cont [8/16] %v307, 128
    %927 = vxpose.xlu0.b32.cont [9/16] %v311, 128
    %928 = vxpose.xlu0.b32.cont [10/16] %v315, 128
    %929 = vxpose.xlu0.b32.cont [11/16] %v319, 128
    %930 = vxpose.xlu0.b32.cont [12/16] %v323, 128
    %931 = vxpose.xlu0.b32.cont [13/16] %v327, 128
    %932 = vxpose.xlu0.b32.cont [14/16] %v331, 128
    %933 = vxpose.xlu0.b32.cont [15/16] %v335, 128
    %934 = vxpose.xlu0.b32.end [16/16] %v339, 128
    %v935 = vpop.trf.xlu0
    %v936 = vpop.trf.xlu0
    %v937 = vpop.trf.xlu0
    %v938 = vpop.trf.xlu0
    %v939 = vpop.trf.xlu0
    %v940 = vpop.trf.xlu0
    %v941 = vpop.trf.xlu0
    %v942 = vpop.trf.xlu0
    %v943 = vpop.trf.xlu0
    %v944 = vpop.trf.xlu0
    %v945 = vpop.trf.xlu0
    %v946 = vpop.trf.xlu0
    %v947 = vpop.trf.xlu0
    %v948 = vpop.trf.xlu0
    %v949 = vpop.trf.xlu0
    %v950 = vpop.trf.xlu0
    %951 = vxpose.xlu0.b32.start [1/16] %v280, 128
    %952 = vxpose.xlu0.b32.cont [2/16] %v284, 128
    %953 = vxpose.xlu0.b32.cont [3/16] %v288, 128
    %954 = vxpose.xlu0.b32.cont [4/16] %v292, 128
    %955 = vxpose.xlu0.b32.cont [5/16] %v296, 128
    %956 = vxpose.xlu0.b32.cont [6/16] %v300, 128
    %957 = vxpose.xlu0.b32.cont [7/16] %v304, 128
    %958 = vxpose.xlu0.b32.cont [8/16] %v308, 128
    %959 = vxpose.xlu0.b32.cont [9/16] %v312, 128
    %960 = vxpose.xlu0.b32.cont [10/16] %v316, 128
    %961 = vxpose.xlu0.b32.cont [11/16] %v320, 128
    %962 = vxpose.xlu0.b32.cont [12/16] %v324, 128
    %963 = vxpose.xlu0.b32.cont [13/16] %v328, 128
    %964 = vxpose.xlu0.b32.cont [14/16] %v332, 128
    %965 = vxpose.xlu0.b32.cont [15/16] %v336, 128
    %966 = vxpose.xlu0.b32.end [16/16] %v340, 128
    %v967 = vpop.trf.xlu0
    %v968 = vpop.trf.xlu0
    %v969 = vpop.trf.xlu0
    %v970 = vpop.trf.xlu0
    %v971 = vpop.trf.xlu0
    %v972 = vpop.trf.xlu0
    %v973 = vpop.trf.xlu0
    %v974 = vpop.trf.xlu0
    %v975 = vpop.trf.xlu0
    %v976 = vpop.trf.xlu0
    %v977 = vpop.trf.xlu0
    %v978 = vpop.trf.xlu0
    %v979 = vpop.trf.xlu0
    %v980 = vpop.trf.xlu0
    %v981 = vpop.trf.xlu0
    %v982 = vpop.trf.xlu0
    %983 = vxpose.xlu0.b32.start [1/16] %v281, 128
    %984 = vxpose.xlu0.b32.cont [2/16] %v285, 128
    %985 = vxpose.xlu0.b32.cont [3/16] %v289, 128
    %986 = vxpose.xlu0.b32.cont [4/16] %v293, 128
    %987 = vxpose.xlu0.b32.cont [5/16] %v297, 128
    %988 = vxpose.xlu0.b32.cont [6/16] %v301, 128
    %989 = vxpose.xlu0.b32.cont [7/16] %v305, 128
    %990 = vxpose.xlu0.b32.cont [8/16] %v309, 128
    %991 = vxpose.xlu0.b32.cont [9/16] %v313, 128
    %992 = vxpose.xlu0.b32.cont [10/16] %v317, 128
    %993 = vxpose.xlu0.b32.cont [11/16] %v321, 128
    %994 = vxpose.xlu0.b32.cont [12/16] %v325, 128
    %995 = vxpose.xlu0.b32.cont [13/16] %v329, 128
    %996 = vxpose.xlu0.b32.cont [14/16] %v333, 128
    %997 = vxpose.xlu0.b32.cont [15/16] %v337, 128
    %998 = vxpose.xlu0.b32.end [16/16] %v341, 128
    %v999 = vpop.trf.xlu0
    %v1000 = vpop.trf.xlu0
    %v1001 = vpop.trf.xlu0
    %v1002 = vpop.trf.xlu0
    %v1003 = vpop.trf.xlu0
    %v1004 = vpop.trf.xlu0
    %v1005 = vpop.trf.xlu0
    %v1006 = vpop.trf.xlu0
    %v1007 = vpop.trf.xlu0
    %v1008 = vpop.trf.xlu0
    %v1009 = vpop.trf.xlu0
    %v1010 = vpop.trf.xlu0
    %v1011 = vpop.trf.xlu0
    %v1012 = vpop.trf.xlu0
    %v1013 = vpop.trf.xlu0
    %v1014 = vpop.trf.xlu0
    %1015 = vxpose.xlu0.b32.start [1/16] %v282, 128
    %1016 = vxpose.xlu0.b32.cont [2/16] %v286, 128
    %1017 = vxpose.xlu0.b32.cont [3/16] %v290, 128
    %1018 = vxpose.xlu0.b32.cont [4/16] %v294, 128
    %1019 = vxpose.xlu0.b32.cont [5/16] %v298, 128
    %1020 = vxpose.xlu0.b32.cont [6/16] %v302, 128
    %1021 = vxpose.xlu0.b32.cont [7/16] %v306, 128
    %1022 = vxpose.xlu0.b32.cont [8/16] %v310, 128
    %1023 = vxpose.xlu0.b32.cont [9/16] %v314, 128
    %1024 = vxpose.xlu0.b32.cont [10/16] %v318, 128
    %1025 = vxpose.xlu0.b32.cont [11/16] %v322, 128
    %1026 = vxpose.xlu0.b32.cont [12/16] %v326, 128
    %1027 = vxpose.xlu0.b32.cont [13/16] %v330, 128
    %1028 = vxpose.xlu0.b32.cont [14/16] %v334, 128
    %1029 = vxpose.xlu0.b32.cont [15/16] %v338, 128
    %1030 = vxpose.xlu0.b32.end [16/16] %v342, 128
    %v1031 = vpop.trf.xlu0
    %v1032 = vpop.trf.xlu0
    %v1033 = vpop.trf.xlu0
    %v1034 = vpop.trf.xlu0
    %v1035 = vpop.trf.xlu0
    %v1036 = vpop.trf.xlu0
    %v1037 = vpop.trf.xlu0
    %v1038 = vpop.trf.xlu0
    %v1039 = vpop.trf.xlu0
    %v1040 = vpop.trf.xlu0
    %v1041 = vpop.trf.xlu0
    %v1042 = vpop.trf.xlu0
    %v1043 = vpop.trf.xlu0
    %v1044 = vpop.trf.xlu0
    %v1045 = vpop.trf.xlu0
    %v1046 = vpop.trf.xlu0
    %1047 = vxpose.xlu0.b32.start [1/16] %v343, 128
    %1048 = vxpose.xlu0.b32.cont [2/16] %v347, 128
    %1049 = vxpose.xlu0.b32.cont [3/16] %v351, 128
    %1050 = vxpose.xlu0.b32.cont [4/16] %v355, 128
    %1051 = vxpose.xlu0.b32.cont [5/16] %v359, 128
    %1052 = vxpose.xlu0.b32.cont [6/16] %v363, 128
    %1053 = vxpose.xlu0.b32.cont [7/16] %v367, 128
    %1054 = vxpose.xlu0.b32.cont [8/16] %v371, 128
    %1055 = vxpose.xlu0.b32.cont [9/16] %v375, 128
    %1056 = vxpose.xlu0.b32.cont [10/16] %v379, 128
    %1057 = vxpose.xlu0.b32.cont [11/16] %v383, 128
    %1058 = vxpose.xlu0.b32.cont [12/16] %v387, 128
    %1059 = vxpose.xlu0.b32.cont [13/16] %v391, 128
    %1060 = vxpose.xlu0.b32.cont [14/16] %v395, 128
    %1061 = vxpose.xlu0.b32.cont [15/16] %v399, 128
    %1062 = vxpose.xlu0.b32.end [16/16] %v403, 128
    %v1063 = vpop.trf.xlu0
    %v1064 = vpop.trf.xlu0
    %v1065 = vpop.trf.xlu0
    %v1066 = vpop.trf.xlu0
    %v1067 = vpop.trf.xlu0
    %v1068 = vpop.trf.xlu0
    %v1069 = vpop.trf.xlu0
    %v1070 = vpop.trf.xlu0
    %v1071 = vpop.trf.xlu0
    %v1072 = vpop.trf.xlu0
    %v1073 = vpop.trf.xlu0
    %v1074 = vpop.trf.xlu0
    %v1075 = vpop.trf.xlu0
    %v1076 = vpop.trf.xlu0
    %v1077 = vpop.trf.xlu0
    %v1078 = vpop.trf.xlu0
    %1079 = vxpose.xlu0.b32.start [1/16] %v344, 128
    %1080 = vxpose.xlu0.b32.cont [2/16] %v348, 128
    %1081 = vxpose.xlu0.b32.cont [3/16] %v352, 128
    %1082 = vxpose.xlu0.b32.cont [4/16] %v356, 128
    %1083 = vxpose.xlu0.b32.cont [5/16] %v360, 128
    %1084 = vxpose.xlu0.b32.cont [6/16] %v364, 128
    %1085 = vxpose.xlu0.b32.cont [7/16] %v368, 128
    %1086 = vxpose.xlu0.b32.cont [8/16] %v372, 128
    %1087 = vxpose.xlu0.b32.cont [9/16] %v376, 128
    %1088 = vxpose.xlu0.b32.cont [10/16] %v380, 128
    %1089 = vxpose.xlu0.b32.cont [11/16] %v384, 128
    %1090 = vxpose.xlu0.b32.cont [12/16] %v388, 128
    %1091 = vxpose.xlu0.b32.cont [13/16] %v392, 128
    %1092 = vxpose.xlu0.b32.cont [14/16] %v396, 128
    %1093 = vxpose.xlu0.b32.cont [15/16] %v400, 128
    %1094 = vxpose.xlu0.b32.end [16/16] %v404, 128
    %v1095 = vpop.trf.xlu0
    %v1096 = vpop.trf.xlu0
    %v1097 = vpop.trf.xlu0
    %v1098 = vpop.trf.xlu0
    %v1099 = vpop.trf.xlu0
    %v1100 = vpop.trf.xlu0
    %v1101 = vpop.trf.xlu0
    %v1102 = vpop.trf.xlu0
    %v1103 = vpop.trf.xlu0
    %v1104 = vpop.trf.xlu0
    %v1105 = vpop.trf.xlu0
    %v1106 = vpop.trf.xlu0
    %v1107 = vpop.trf.xlu0
    %v1108 = vpop.trf.xlu0
    %v1109 = vpop.trf.xlu0
    %v1110 = vpop.trf.xlu0
    %1111 = vxpose.xlu0.b32.start [1/16] %v345, 128
    %1112 = vxpose.xlu0.b32.cont [2/16] %v349, 128
    %1113 = vxpose.xlu0.b32.cont [3/16] %v353, 128
    %1114 = vxpose.xlu0.b32.cont [4/16] %v357, 128
    %1115 = vxpose.xlu0.b32.cont [5/16] %v361, 128
    %1116 = vxpose.xlu0.b32.cont [6/16] %v365, 128
    %1117 = vxpose.xlu0.b32.cont [7/16] %v369, 128
    %1118 = vxpose.xlu0.b32.cont [8/16] %v373, 128
    %1119 = vxpose.xlu0.b32.cont [9/16] %v377, 128
    %1120 = vxpose.xlu0.b32.cont [10/16] %v381, 128
    %1121 = vxpose.xlu0.b32.cont [11/16] %v385, 128
    %1122 = vxpose.xlu0.b32.cont [12/16] %v389, 128
    %1123 = vxpose.xlu0.b32.cont [13/16] %v393, 128
    %1124 = vxpose.xlu0.b32.cont [14/16] %v397, 128
    %1125 = vxpose.xlu0.b32.cont [15/16] %v401, 128
    %1126 = vxpose.xlu0.b32.end [16/16] %v405, 128
    %v1127 = vpop.trf.xlu0
    %v1128 = vpop.trf.xlu0
    %v1129 = vpop.trf.xlu0
    %v1130 = vpop.trf.xlu0
    %v1131 = vpop.trf.xlu0
    %v1132 = vpop.trf.xlu0
    %v1133 = vpop.trf.xlu0
    %v1134 = vpop.trf.xlu0
    %v1135 = vpop.trf.xlu0
    %v1136 = vpop.trf.xlu0
    %v1137 = vpop.trf.xlu0
    %v1138 = vpop.trf.xlu0
    %v1139 = vpop.trf.xlu0
    %v1140 = vpop.trf.xlu0
    %v1141 = vpop.trf.xlu0
    %v1142 = vpop.trf.xlu0
    %1143 = vxpose.xlu0.b32.start [1/16] %v346, 128
    %1144 = vxpose.xlu0.b32.cont [2/16] %v350, 128
    %1145 = vxpose.xlu0.b32.cont [3/16] %v354, 128
    %1146 = vxpose.xlu0.b32.cont [4/16] %v358, 128
    %1147 = vxpose.xlu0.b32.cont [5/16] %v362, 128
    %1148 = vxpose.xlu0.b32.cont [6/16] %v366, 128
    %1149 = vxpose.xlu0.b32.cont [7/16] %v370, 128
    %1150 = vxpose.xlu0.b32.cont [8/16] %v374, 128
    %1151 = vxpose.xlu0.b32.cont [9/16] %v378, 128
    %1152 = vxpose.xlu0.b32.cont [10/16] %v382, 128
    %1153 = vxpose.xlu0.b32.cont [11/16] %v386, 128
    %1154 = vxpose.xlu0.b32.cont [12/16] %v390, 128
    %1155 = vxpose.xlu0.b32.cont [13/16] %v394, 128
    %1156 = vxpose.xlu0.b32.cont [14/16] %v398, 128
    %1157 = vxpose.xlu0.b32.cont [15/16] %v402, 128
    %1158 = vxpose.xlu0.b32.end [16/16] %v406, 128
    %v1159 = vpop.trf.xlu0
    %v1160 = vpop.trf.xlu0
    %v1161 = vpop.trf.xlu0
    %v1162 = vpop.trf.xlu0
    %v1163 = vpop.trf.xlu0
    %v1164 = vpop.trf.xlu0
    %v1165 = vpop.trf.xlu0
    %v1166 = vpop.trf.xlu0
    %v1167 = vpop.trf.xlu0
    %v1168 = vpop.trf.xlu0
    %v1169 = vpop.trf.xlu0
    %v1170 = vpop.trf.xlu0
    %v1171 = vpop.trf.xlu0
    %v1172 = vpop.trf.xlu0
    %v1173 = vpop.trf.xlu0
    %v1174 = vpop.trf.xlu0
    %1175 = vst [vmem:[#allocation5] sm:$0xff] %v423
    %1176 = vst [vmem:[#allocation5 + $0x8] sm:$0xff] %v551
    %1177 = vst [vmem:[#allocation5 + $0x10] sm:$0xff] %v679
    %1178 = vst [vmem:[#allocation5 + $0x18] sm:$0xff] %v424
    %1179 = vst [vmem:[#allocation5 + $0x20] sm:$0xff] %v552
    %1180 = vst [vmem:[#allocation5 + $0x28] sm:$0xff] %v680
    %1181 = vst [vmem:[#allocation5 + $0x30] sm:$0xff] %v425
    %1182 = vst [vmem:[#allocation5 + $0x38] sm:$0xff] %v553
    %1183 = vst [vmem:[#allocation5 + $0x40] sm:$0xff] %v681
    %1184 = vst [vmem:[#allocation5 + $0x48] sm:$0xff] %v426
    %1185 = vst [vmem:[#allocation5 + $0x50] sm:$0xff] %v554
    %1186 = vst [vmem:[#allocation5 + $0x58] sm:$0xff] %v682
    %1187 = vst [vmem:[#allocation5 + $0x60] sm:$0xff] %v427
    %1188 = vst [vmem:[#allocation5 + $0x68] sm:$0xff] %v555
    %1189 = vst [vmem:[#allocation5 + $0x70] sm:$0xff] %v683
    %1190 = vst [vmem:[#allocation5 + $0x78] sm:$0xff] %v428
    %1191 = vst [vmem:[#allocation5 + $0x80] sm:$0xff] %v556
    %1192 = vst [vmem:[#allocation5 + $0x88] sm:$0xff] %v684
    %1193 = vst [vmem:[#allocation5 + $0x90] sm:$0xff] %v429
    %1194 = vst [vmem:[#allocation5 + $0x98] sm:$0xff] %v557
    %1195 = vst [vmem:[#allocation5 + $0xa0] sm:$0xff] %v685
    %1196 = vst [vmem:[#allocation5 + $0xa8] sm:$0xff] %v430
    %1197 = vst [vmem:[#allocation5 + $0xb0] sm:$0xff] %v558
    %1198 = vst [vmem:[#allocation5 + $0xb8] sm:$0xff] %v686
    %1199 = vst [vmem:[#allocation5 + $0xc0] sm:$0xff] %v431
    %1200 = vst [vmem:[#allocation5 + $0xc8] sm:$0xff] %v559
    %1201 = vst [vmem:[#allocation5 + $0xd0] sm:$0xff] %v687
    %1202 = vst [vmem:[#allocation5 + $0xd8] sm:$0xff] %v432
    %1203 = vst [vmem:[#allocation5 + $0xe0] sm:$0xff] %v560
    %1204 = vst [vmem:[#allocation5 + $0xe8] sm:$0xff] %v688
    %1205 = vst [vmem:[#allocation5 + $0xf0] sm:$0xff] %v433
    %1206 = vst [vmem:[#allocation5 + $0xf8] sm:$0xff] %v561
    %1207 = vst [vmem:[#allocation5 + $0x100] sm:$0xff] %v689
    %1208 = vst [vmem:[#allocation5 + $0x108] sm:$0xff] %v434
    %1209 = vst [vmem:[#allocation5 + $0x110] sm:$0xff] %v562
    %1210 = vst [vmem:[#allocation5 + $0x118] sm:$0xff] %v690
    %1211 = vst [vmem:[#allocation5 + $0x120] sm:$0xff] %v435
    %1212 = vst [vmem:[#allocation5 + $0x128] sm:$0xff] %v563
    %1213 = vst [vmem:[#allocation5 + $0x130] sm:$0xff] %v691
    %1214 = vst [vmem:[#allocation5 + $0x138] sm:$0xff] %v436
    %1215 = vst [vmem:[#allocation5 + $0x140] sm:$0xff] %v564
    %1216 = vst [vmem:[#allocation5 + $0x148] sm:$0xff] %v692
    %1217 = vst [vmem:[#allocation5 + $0x150] sm:$0xff] %v437
    %1218 = vst [vmem:[#allocation5 + $0x158] sm:$0xff] %v565
    %1219 = vst [vmem:[#allocation5 + $0x160] sm:$0xff] %v693
    %1220 = vst [vmem:[#allocation5 + $0x168] sm:$0xff] %v438
    %1221 = vst [vmem:[#allocation5 + $0x170] sm:$0xff] %v566
    %1222 = vst [vmem:[#allocation5 + $0x178] sm:$0xff] %v694
    %1223 = vst [vmem:[#allocation5 + $0x180] sm:$0xff] %v455
    %1224 = vst [vmem:[#allocation5 + $0x188] sm:$0xff] %v583
    %1225 = vst [vmem:[#allocation5 + $0x190] sm:$0xff] %v711
    %1226 = vst [vmem:[#allocation5 + $0x198] sm:$0xff] %v456
    %1227 = vst [vmem:[#allocation5 + $0x1a0] sm:$0xff] %v584
    %1228 = vst [vmem:[#allocation5 + $0x1a8] sm:$0xff] %v712
    %1229 = vst [vmem:[#allocation5 + $0x1b0] sm:$0xff] %v457
    %1230 = vst [vmem:[#allocation5 + $0x1b8] sm:$0xff] %v585
    %1231 = vst [vmem:[#allocation5 + $0x1c0] sm:$0xff] %v713
    %1232 = vst [vmem:[#allocation5 + $0x1c8] sm:$0xff] %v458
    %1233 = vst [vmem:[#allocation5 + $0x1d0] sm:$0xff] %v586
    %1234 = vst [vmem:[#allocation5 + $0x1d8] sm:$0xff] %v714
    %1235 = vst [vmem:[#allocation5 + $0x1e0] sm:$0xff] %v459
    %1236 = vst [vmem:[#allocation5 + $0x1e8] sm:$0xff] %v587
    %1237 = vst [vmem:[#allocation5 + $0x1f0] sm:$0xff] %v715
    %1238 = vst [vmem:[#allocation5 + $0x1f8] sm:$0xff] %v460
    %1239 = vst [vmem:[#allocation5 + $0x200] sm:$0xff] %v588
    %1240 = vst [vmem:[#allocation5 + $0x208] sm:$0xff] %v716
    %1241 = vst [vmem:[#allocation5 + $0x210] sm:$0xff] %v461
    %1242 = vst [vmem:[#allocation5 + $0x218] sm:$0xff] %v589
    %1243 = vst [vmem:[#allocation5 + $0x220] sm:$0xff] %v717
    %1244 = vst [vmem:[#allocation5 + $0x228] sm:$0xff] %v462
    %1245 = vst [vmem:[#allocation5 + $0x230] sm:$0xff] %v590
    %1246 = vst [vmem:[#allocation5 + $0x238] sm:$0xff] %v718
    %1247 = vst [vmem:[#allocation5 + $0x240] sm:$0xff] %v463
    %1248 = vst [vmem:[#allocation5 + $0x248] sm:$0xff] %v591
    %1249 = vst [vmem:[#allocation5 + $0x250] sm:$0xff] %v719
    %1250 = vst [vmem:[#allocation5 + $0x258] sm:$0xff] %v464
    %1251 = vst [vmem:[#allocation5 + $0x260] sm:$0xff] %v592
    %1252 = vst [vmem:[#allocation5 + $0x268] sm:$0xff] %v720
    %1253 = vst [vmem:[#allocation5 + $0x270] sm:$0xff] %v465
    %1254 = vst [vmem:[#allocation5 + $0x278] sm:$0xff] %v593
    %1255 = vst [vmem:[#allocation5 + $0x280] sm:$0xff] %v721
    %1256 = vst [vmem:[#allocation5 + $0x288] sm:$0xff] %v466
    %1257 = vst [vmem:[#allocation5 + $0x290] sm:$0xff] %v594
    %1258 = vst [vmem:[#allocation5 + $0x298] sm:$0xff] %v722
    %1259 = vst [vmem:[#allocation5 + $0x2a0] sm:$0xff] %v467
    %1260 = vst [vmem:[#allocation5 + $0x2a8] sm:$0xff] %v595
    %1261 = vst [vmem:[#allocation5 + $0x2b0] sm:$0xff] %v723
    %1262 = vst [vmem:[#allocation5 + $0x2b8] sm:$0xff] %v468
    %1263 = vst [vmem:[#allocation5 + $0x2c0] sm:$0xff] %v596
    %1264 = vst [vmem:[#allocation5 + $0x2c8] sm:$0xff] %v724
    %1265 = vst [vmem:[#allocation5 + $0x2d0] sm:$0xff] %v469
    %1266 = vst [vmem:[#allocation5 + $0x2d8] sm:$0xff] %v597
    %1267 = vst [vmem:[#allocation5 + $0x2e0] sm:$0xff] %v725
    %1268 = vst [vmem:[#allocation5 + $0x2e8] sm:$0xff] %v470
    %1269 = vst [vmem:[#allocation5 + $0x2f0] sm:$0xff] %v598
    %1270 = vst [vmem:[#allocation5 + $0x2f8] sm:$0xff] %v726
    %1271 = vst [vmem:[#allocation5 + $0x300] sm:$0xff] %v487
    %1272 = vst [vmem:[#allocation5 + $0x308] sm:$0xff] %v615
    %1273 = vst [vmem:[#allocation5 + $0x310] sm:$0xff] %v743
    %1274 = vst [vmem:[#allocation5 + $0x318] sm:$0xff] %v488
    %1275 = vst [vmem:[#allocation5 + $0x320] sm:$0xff] %v616
    %1276 = vst [vmem:[#allocation5 + $0x328] sm:$0xff] %v744
    %1277 = vst [vmem:[#allocation5 + $0x330] sm:$0xff] %v489
    %1278 = vst [vmem:[#allocation5 + $0x338] sm:$0xff] %v617
    %1279 = vst [vmem:[#allocation5 + $0x340] sm:$0xff] %v745
    %1280 = vst [vmem:[#allocation5 + $0x348] sm:$0xff] %v490
    %1281 = vst [vmem:[#allocation5 + $0x350] sm:$0xff] %v618
    %1282 = vst [vmem:[#allocation5 + $0x358] sm:$0xff] %v746
    %1283 = vst [vmem:[#allocation5 + $0x360] sm:$0xff] %v491
    %1284 = vst [vmem:[#allocation5 + $0x368] sm:$0xff] %v619
    %1285 = vst [vmem:[#allocation5 + $0x370] sm:$0xff] %v747
    %1286 = vst [vmem:[#allocation5 + $0x378] sm:$0xff] %v492
    %1287 = vst [vmem:[#allocation5 + $0x380] sm:$0xff] %v620
    %1288 = vst [vmem:[#allocation5 + $0x388] sm:$0xff] %v748
    %1289 = vst [vmem:[#allocation5 + $0x390] sm:$0xff] %v493
    %1290 = vst [vmem:[#allocation5 + $0x398] sm:$0xff] %v621
    %1291 = vst [vmem:[#allocation5 + $0x3a0] sm:$0xff] %v749
    %1292 = vst [vmem:[#allocation5 + $0x3a8] sm:$0xff] %v494
    %1293 = vst [vmem:[#allocation5 + $0x3b0] sm:$0xff] %v622
    %1294 = vst [vmem:[#allocation5 + $0x3b8] sm:$0xff] %v750
    %1295 = vst [vmem:[#allocation5 + $0x3c0] sm:$0xff] %v495
    %1296 = vst [vmem:[#allocation5 + $0x3c8] sm:$0xff] %v623
    %1297 = vst [vmem:[#allocation5 + $0x3d0] sm:$0xff] %v751
    %1298 = vst [vmem:[#allocation5 + $0x3d8] sm:$0xff] %v496
    %1299 = vst [vmem:[#allocation5 + $0x3e0] sm:$0xff] %v624
    %1300 = vst [vmem:[#allocation5 + $0x3e8] sm:$0xff] %v752
    %1301 = vst [vmem:[#allocation5 + $0x3f0] sm:$0xff] %v497
    %1302 = vst [vmem:[#allocation5 + $0x3f8] sm:$0xff] %v625
    %1303 = vst [vmem:[#allocation5 + $0x400] sm:$0xff] %v753
    %1304 = vst [vmem:[#allocation5 + $0x408] sm:$0xff] %v498
    %1305 = vst [vmem:[#allocation5 + $0x410] sm:$0xff] %v626
    %1306 = vst [vmem:[#allocation5 + $0x418] sm:$0xff] %v754
    %1307 = vst [vmem:[#allocation5 + $0x420] sm:$0xff] %v499
    %1308 = vst [vmem:[#allocation5 + $0x428] sm:$0xff] %v627
    %1309 = vst [vmem:[#allocation5 + $0x430] sm:$0xff] %v755
    %1310 = vst [vmem:[#allocation5 + $0x438] sm:$0xff] %v500
    %1311 = vst [vmem:[#allocation5 + $0x440] sm:$0xff] %v628
    %1312 = vst [vmem:[#allocation5 + $0x448] sm:$0xff] %v756
    %1313 = vst [vmem:[#allocation5 + $0x450] sm:$0xff] %v501
    %1314 = vst [vmem:[#allocation5 + $0x458] sm:$0xff] %v629
    %1315 = vst [vmem:[#allocation5 + $0x460] sm:$0xff] %v757
    %1316 = vst [vmem:[#allocation5 + $0x468] sm:$0xff] %v502
    %1317 = vst [vmem:[#allocation5 + $0x470] sm:$0xff] %v630
    %1318 = vst [vmem:[#allocation5 + $0x478] sm:$0xff] %v758
    %1319 = vst [vmem:[#allocation5 + $0x480] sm:$0xff] %v519
    %1320 = vst [vmem:[#allocation5 + $0x488] sm:$0xff] %v647
    %1321 = vst [vmem:[#allocation5 + $0x490] sm:$0xff] %v775
    %1322 = vst [vmem:[#allocation5 + $0x498] sm:$0xff] %v520
    %1323 = vst [vmem:[#allocation5 + $0x4a0] sm:$0xff] %v648
    %1324 = vst [vmem:[#allocation5 + $0x4a8] sm:$0xff] %v776
    %1325 = vst [vmem:[#allocation5 + $0x4b0] sm:$0xff] %v521
    %1326 = vst [vmem:[#allocation5 + $0x4b8] sm:$0xff] %v649
    %1327 = vst [vmem:[#allocation5 + $0x4c0] sm:$0xff] %v777
    %1328 = vst [vmem:[#allocation5 + $0x4c8] sm:$0xff] %v522
    %1329 = vst [vmem:[#allocation5 + $0x4d0] sm:$0xff] %v650
    %1330 = vst [vmem:[#allocation5 + $0x4d8] sm:$0xff] %v778
    %1331 = vst [vmem:[#allocation5 + $0x4e0] sm:$0xff] %v523
    %1332 = vst [vmem:[#allocation5 + $0x4e8] sm:$0xff] %v651
    %1333 = vst [vmem:[#allocation5 + $0x4f0] sm:$0xff] %v779
    %1334 = vst [vmem:[#allocation5 + $0x4f8] sm:$0xff] %v524
    %1335 = vst [vmem:[#allocation5 + $0x500] sm:$0xff] %v652
    %1336 = vst [vmem:[#allocation5 + $0x508] sm:$0xff] %v780
    %1337 = vst [vmem:[#allocation5 + $0x510] sm:$0xff] %v525
    %1338 = vst [vmem:[#allocation5 + $0x518] sm:$0xff] %v653
    %1339 = vst [vmem:[#allocation5 + $0x520] sm:$0xff] %v781
    %1340 = vst [vmem:[#allocation5 + $0x528] sm:$0xff] %v526
    %1341 = vst [vmem:[#allocation5 + $0x530] sm:$0xff] %v654
    %1342 = vst [vmem:[#allocation5 + $0x538] sm:$0xff] %v782
    %1343 = vst [vmem:[#allocation5 + $0x540] sm:$0xff] %v527
    %1344 = vst [vmem:[#allocation5 + $0x548] sm:$0xff] %v655
    %1345 = vst [vmem:[#allocation5 + $0x550] sm:$0xff] %v783
    %1346 = vst [vmem:[#allocation5 + $0x558] sm:$0xff] %v528
    %1347 = vst [vmem:[#allocation5 + $0x560] sm:$0xff] %v656
    %1348 = vst [vmem:[#allocation5 + $0x568] sm:$0xff] %v784
    %1349 = vst [vmem:[#allocation5 + $0x570] sm:$0xff] %v529
    %1350 = vst [vmem:[#allocation5 + $0x578] sm:$0xff] %v657
    %1351 = vst [vmem:[#allocation5 + $0x580] sm:$0xff] %v785
    %1352 = vst [vmem:[#allocation5 + $0x588] sm:$0xff] %v530
    %1353 = vst [vmem:[#allocation5 + $0x590] sm:$0xff] %v658
    %1354 = vst [vmem:[#allocation5 + $0x598] sm:$0xff] %v786
    %1355 = vst [vmem:[#allocation5 + $0x5a0] sm:$0xff] %v531
    %1356 = vst [vmem:[#allocation5 + $0x5a8] sm:$0xff] %v659
    %1357 = vst [vmem:[#allocation5 + $0x5b0] sm:$0xff] %v787
    %1358 = vst [vmem:[#allocation5 + $0x5b8] sm:$0xff] %v532
    %1359 = vst [vmem:[#allocation5 + $0x5c0] sm:$0xff] %v660
    %1360 = vst [vmem:[#allocation5 + $0x5c8] sm:$0xff] %v788
    %1361 = vst [vmem:[#allocation5 + $0x5d0] sm:$0xff] %v533
    %1362 = vst [vmem:[#allocation5 + $0x5d8] sm:$0xff] %v661
    %1363 = vst [vmem:[#allocation5 + $0x5e0] sm:$0xff] %v789
    %1364 = vst [vmem:[#allocation5 + $0x5e8] sm:$0xff] %v534
    %1365 = vst [vmem:[#allocation5 + $0x5f0] sm:$0xff] %v662
    %1366 = vst [vmem:[#allocation5 + $0x5f8] sm:$0xff] %v790
    %1367 = vst [vmem:[#allocation5 + $0x600] sm:$0xff] %v807
    %1368 = vst [vmem:[#allocation5 + $0x608] sm:$0xff] %v935
    %1369 = vst [vmem:[#allocation5 + $0x610] sm:$0xff] %v1063
    %1370 = vst [vmem:[#allocation5 + $0x618] sm:$0xff] %v808
    %1371 = vst [vmem:[#allocation5 + $0x620] sm:$0xff] %v936
    %1372 = vst [vmem:[#allocation5 + $0x628] sm:$0xff] %v1064
    %1373 = vst [vmem:[#allocation5 + $0x630] sm:$0xff] %v809
    %1374 = vst [vmem:[#allocation5 + $0x638] sm:$0xff] %v937
    %1375 = vst [vmem:[#allocation5 + $0x640] sm:$0xff] %v1065
    %1376 = vst [vmem:[#allocation5 + $0x648] sm:$0xff] %v810
    %1377 = vst [vmem:[#allocation5 + $0x650] sm:$0xff] %v938
    %1378 = vst [vmem:[#allocation5 + $0x658] sm:$0xff] %v1066
    %1379 = vst [vmem:[#allocation5 + $0x660] sm:$0xff] %v811
    %1380 = vst [vmem:[#allocation5 + $0x668] sm:$0xff] %v939
    %1381 = vst [vmem:[#allocation5 + $0x670] sm:$0xff] %v1067
    %1382 = vst [vmem:[#allocation5 + $0x678] sm:$0xff] %v812
    %1383 = vst [vmem:[#allocation5 + $0x680] sm:$0xff] %v940
    %1384 = vst [vmem:[#allocation5 + $0x688] sm:$0xff] %v1068
    %1385 = vst [vmem:[#allocation5 + $0x690] sm:$0xff] %v813
    %1386 = vst [vmem:[#allocation5 + $0x698] sm:$0xff] %v941
    %1387 = vst [vmem:[#allocation5 + $0x6a0] sm:$0xff] %v1069
    %1388 = vst [vmem:[#allocation5 + $0x6a8] sm:$0xff] %v814
    %1389 = vst [vmem:[#allocation5 + $0x6b0] sm:$0xff] %v942
    %1390 = vst [vmem:[#allocation5 + $0x6b8] sm:$0xff] %v1070
    %1391 = vst [vmem:[#allocation5 + $0x6c0] sm:$0xff] %v815
    %1392 = vst [vmem:[#allocation5 + $0x6c8] sm:$0xff] %v943
    %1393 = vst [vmem:[#allocation5 + $0x6d0] sm:$0xff] %v1071
    %1394 = vst [vmem:[#allocation5 + $0x6d8] sm:$0xff] %v816
    %1395 = vst [vmem:[#allocation5 + $0x6e0] sm:$0xff] %v944
    %1396 = vst [vmem:[#allocation5 + $0x6e8] sm:$0xff] %v1072
    %1397 = vst [vmem:[#allocation5 + $0x6f0] sm:$0xff] %v817
    %1398 = vst [vmem:[#allocation5 + $0x6f8] sm:$0xff] %v945
    %1399 = vst [vmem:[#allocation5 + $0x700] sm:$0xff] %v1073
    %1400 = vst [vmem:[#allocation5 + $0x708] sm:$0xff] %v818
    %1401 = vst [vmem:[#allocation5 + $0x710] sm:$0xff] %v946
    %1402 = vst [vmem:[#allocation5 + $0x718] sm:$0xff] %v1074
    %1403 = vst [vmem:[#allocation5 + $0x720] sm:$0xff] %v819
    %1404 = vst [vmem:[#allocation5 + $0x728] sm:$0xff] %v947
    %1405 = vst [vmem:[#allocation5 + $0x730] sm:$0xff] %v1075
    %1406 = vst [vmem:[#allocation5 + $0x738] sm:$0xff] %v820
    %1407 = vst [vmem:[#allocation5 + $0x740] sm:$0xff] %v948
    %1408 = vst [vmem:[#allocation5 + $0x748] sm:$0xff] %v1076
    %1409 = vst [vmem:[#allocation5 + $0x750] sm:$0xff] %v821
    %1410 = vst [vmem:[#allocation5 + $0x758] sm:$0xff] %v949
    %1411 = vst [vmem:[#allocation5 + $0x760] sm:$0xff] %v1077
    %1412 = vst [vmem:[#allocation5 + $0x768] sm:$0xff] %v822
    %1413 = vst [vmem:[#allocation5 + $0x770] sm:$0xff] %v950
    %1414 = vst [vmem:[#allocation5 + $0x778] sm:$0xff] %v1078
    %1415 = vst [vmem:[#allocation5 + $0x780] sm:$0xff] %v839
    %1416 = vst [vmem:[#allocation5 + $0x788] sm:$0xff] %v967
    %1417 = vst [vmem:[#allocation5 + $0x790] sm:$0xff] %v1095
    %1418 = vst [vmem:[#allocation5 + $0x798] sm:$0xff] %v840
    %1419 = vst [vmem:[#allocation5 + $0x7a0] sm:$0xff] %v968
    %1420 = vst [vmem:[#allocation5 + $0x7a8] sm:$0xff] %v1096
    %1421 = vst [vmem:[#allocation5 + $0x7b0] sm:$0xff] %v841
    %1422 = vst [vmem:[#allocation5 + $0x7b8] sm:$0xff] %v969
    %1423 = vst [vmem:[#allocation5 + $0x7c0] sm:$0xff] %v1097
    %1424 = vst [vmem:[#allocation5 + $0x7c8] sm:$0xff] %v842
    %1425 = vst [vmem:[#allocation5 + $0x7d0] sm:$0xff] %v970
    %1426 = vst [vmem:[#allocation5 + $0x7d8] sm:$0xff] %v1098
    %1427 = vst [vmem:[#allocation5 + $0x7e0] sm:$0xff] %v843
    %1428 = vst [vmem:[#allocation5 + $0x7e8] sm:$0xff] %v971
    %1429 = vst [vmem:[#allocation5 + $0x7f0] sm:$0xff] %v1099
    %1430 = vst [vmem:[#allocation5 + $0x7f8] sm:$0xff] %v844
    %1431 = vst [vmem:[#allocation5 + $0x800] sm:$0xff] %v972
    %1432 = vst [vmem:[#allocation5 + $0x808] sm:$0xff] %v1100
    %1433 = vst [vmem:[#allocation5 + $0x810] sm:$0xff] %v845
    %1434 = vst [vmem:[#allocation5 + $0x818] sm:$0xff] %v973
    %1435 = vst [vmem:[#allocation5 + $0x820] sm:$0xff] %v1101
    %1436 = vst [vmem:[#allocation5 + $0x828] sm:$0xff] %v846
    %1437 = vst [vmem:[#allocation5 + $0x830] sm:$0xff] %v974
    %1438 = vst [vmem:[#allocation5 + $0x838] sm:$0xff] %v1102
    %1439 = vst [vmem:[#allocation5 + $0x840] sm:$0xff] %v847
    %1440 = vst [vmem:[#allocation5 + $0x848] sm:$0xff] %v975
    %1441 = vst [vmem:[#allocation5 + $0x850] sm:$0xff] %v1103
    %1442 = vst [vmem:[#allocation5 + $0x858] sm:$0xff] %v848
    %1443 = vst [vmem:[#allocation5 + $0x860] sm:$0xff] %v976
    %1444 = vst [vmem:[#allocation5 + $0x868] sm:$0xff] %v1104
    %1445 = vst [vmem:[#allocation5 + $0x870] sm:$0xff] %v849
    %1446 = vst [vmem:[#allocation5 + $0x878] sm:$0xff] %v977
    %1447 = vst [vmem:[#allocation5 + $0x880] sm:$0xff] %v1105
    %1448 = vst [vmem:[#allocation5 + $0x888] sm:$0xff] %v850
    %1449 = vst [vmem:[#allocation5 + $0x890] sm:$0xff] %v978
    %1450 = vst [vmem:[#allocation5 + $0x898] sm:$0xff] %v1106
    %1451 = vst [vmem:[#allocation5 + $0x8a0] sm:$0xff] %v851
    %1452 = vst [vmem:[#allocation5 + $0x8a8] sm:$0xff] %v979
    %1453 = vst [vmem:[#allocation5 + $0x8b0] sm:$0xff] %v1107
    %1454 = vst [vmem:[#allocation5 + $0x8b8] sm:$0xff] %v852
    %1455 = vst [vmem:[#allocation5 + $0x8c0] sm:$0xff] %v980
    %1456 = vst [vmem:[#allocation5 + $0x8c8] sm:$0xff] %v1108
    %1457 = vst [vmem:[#allocation5 + $0x8d0] sm:$0xff] %v853
    %1458 = vst [vmem:[#allocation5 + $0x8d8] sm:$0xff] %v981
    %1459 = vst [vmem:[#allocation5 + $0x8e0] sm:$0xff] %v1109
    %1460 = vst [vmem:[#allocation5 + $0x8e8] sm:$0xff] %v854
    %1461 = vst [vmem:[#allocation5 + $0x8f0] sm:$0xff] %v982
    %1462 = vst [vmem:[#allocation5 + $0x8f8] sm:$0xff] %v1110
    %1463 = vst [vmem:[#allocation5 + $0x900] sm:$0xff] %v871
    %1464 = vst [vmem:[#allocation5 + $0x908] sm:$0xff] %v999
    %1465 = vst [vmem:[#allocation5 + $0x910] sm:$0xff] %v1127
    %1466 = vst [vmem:[#allocation5 + $0x918] sm:$0xff] %v872
    %1467 = vst [vmem:[#allocation5 + $0x920] sm:$0xff] %v1000
    %1468 = vst [vmem:[#allocation5 + $0x928] sm:$0xff] %v1128
    %1469 = vst [vmem:[#allocation5 + $0x930] sm:$0xff] %v873
    %1470 = vst [vmem:[#allocation5 + $0x938] sm:$0xff] %v1001
    %1471 = vst [vmem:[#allocation5 + $0x940] sm:$0xff] %v1129
    %1472 = vst [vmem:[#allocation5 + $0x948] sm:$0xff] %v874
    %1473 = vst [vmem:[#allocation5 + $0x950] sm:$0xff] %v1002
    %1474 = vst [vmem:[#allocation5 + $0x958] sm:$0xff] %v1130
    %1475 = vst [vmem:[#allocation5 + $0x960] sm:$0xff] %v875
    %1476 = vst [vmem:[#allocation5 + $0x968] sm:$0xff] %v1003
    %1477 = vst [vmem:[#allocation5 + $0x970] sm:$0xff] %v1131
    %1478 = vst [vmem:[#allocation5 + $0x978] sm:$0xff] %v876
    %1479 = vst [vmem:[#allocation5 + $0x980] sm:$0xff] %v1004
    %1480 = vst [vmem:[#allocation5 + $0x988] sm:$0xff] %v1132
    %1481 = vst [vmem:[#allocation5 + $0x990] sm:$0xff] %v877
    %1482 = vst [vmem:[#allocation5 + $0x998] sm:$0xff] %v1005
    %1483 = vst [vmem:[#allocation5 + $0x9a0] sm:$0xff] %v1133
    %1484 = vst [vmem:[#allocation5 + $0x9a8] sm:$0xff] %v878
    %1485 = vst [vmem:[#allocation5 + $0x9b0] sm:$0xff] %v1006
    %1486 = vst [vmem:[#allocation5 + $0x9b8] sm:$0xff] %v1134
    %1487 = vst [vmem:[#allocation5 + $0x9c0] sm:$0xff] %v879
    %1488 = vst [vmem:[#allocation5 + $0x9c8] sm:$0xff] %v1007
    %1489 = vst [vmem:[#allocation5 + $0x9d0] sm:$0xff] %v1135
    %1490 = vst [vmem:[#allocation5 + $0x9d8] sm:$0xff] %v880
    %1491 = vst [vmem:[#allocation5 + $0x9e0] sm:$0xff] %v1008
    %1492 = vst [vmem:[#allocation5 + $0x9e8] sm:$0xff] %v1136
    %1493 = vst [vmem:[#allocation5 + $0x9f0] sm:$0xff] %v881
    %1494 = vst [vmem:[#allocation5 + $0x9f8] sm:$0xff] %v1009
    %1495 = vst [vmem:[#allocation5 + $0xa00] sm:$0xff] %v1137
    %1496 = vst [vmem:[#allocation5 + $0xa08] sm:$0xff] %v882
    %1497 = vst [vmem:[#allocation5 + $0xa10] sm:$0xff] %v1010
    %1498 = vst [vmem:[#allocation5 + $0xa18] sm:$0xff] %v1138
    %1499 = vst [vmem:[#allocation5 + $0xa20] sm:$0xff] %v883
    %1500 = vst [vmem:[#allocation5 + $0xa28] sm:$0xff] %v1011
    %1501 = vst [vmem:[#allocation5 + $0xa30] sm:$0xff] %v1139
    %1502 = vst [vmem:[#allocation5 + $0xa38] sm:$0xff] %v884
    %1503 = vst [vmem:[#allocation5 + $0xa40] sm:$0xff] %v1012
    %1504 = vst [vmem:[#allocation5 + $0xa48] sm:$0xff] %v1140
    %1505 = vst [vmem:[#allocation5 + $0xa50] sm:$0xff] %v885
    %1506 = vst [vmem:[#allocation5 + $0xa58] sm:$0xff] %v1013
    %1507 = vst [vmem:[#allocation5 + $0xa60] sm:$0xff] %v1141
    %1508 = vst [vmem:[#allocation5 + $0xa68] sm:$0xff] %v886
    %1509 = vst [vmem:[#allocation5 + $0xa70] sm:$0xff] %v1014
    %1510 = vst [vmem:[#allocation5 + $0xa78] sm:$0xff] %v1142
    %1511 = vst [vmem:[#allocation5 + $0xa80] sm:$0xff] %v903
    %1512 = vst [vmem:[#allocation5 + $0xa88] sm:$0xff] %v1031
    %1513 = vst [vmem:[#allocation5 + $0xa90] sm:$0xff] %v1159
    %1514 = vst [vmem:[#allocation5 + $0xa98] sm:$0xff] %v904
    %1515 = vst [vmem:[#allocation5 + $0xaa0] sm:$0xff] %v1032
    %1516 = vst [vmem:[#allocation5 + $0xaa8] sm:$0xff] %v1160
    %1517 = vst [vmem:[#allocation5 + $0xab0] sm:$0xff] %v905
    %1518 = vst [vmem:[#allocation5 + $0xab8] sm:$0xff] %v1033
    %1519 = vst [vmem:[#allocation5 + $0xac0] sm:$0xff] %v1161
    %1520 = vst [vmem:[#allocation5 + $0xac8] sm:$0xff] %v906
    %1521 = vst [vmem:[#allocation5 + $0xad0] sm:$0xff] %v1034
    %1522 = vst [vmem:[#allocation5 + $0xad8] sm:$0xff] %v1162
    %1523 = vst [vmem:[#allocation5 + $0xae0] sm:$0xff] %v907
    %1524 = vst [vmem:[#allocation5 + $0xae8] sm:$0xff] %v1035
    %1525 = vst [vmem:[#allocation5 + $0xaf0] sm:$0xff] %v1163
    %1526 = vst [vmem:[#allocation5 + $0xaf8] sm:$0xff] %v908
    %1527 = vst [vmem:[#allocation5 + $0xb00] sm:$0xff] %v1036
    %1528 = vst [vmem:[#allocation5 + $0xb08] sm:$0xff] %v1164
    %1529 = vst [vmem:[#allocation5 + $0xb10] sm:$0xff] %v909
    %1530 = vst [vmem:[#allocation5 + $0xb18] sm:$0xff] %v1037
    %1531 = vst [vmem:[#allocation5 + $0xb20] sm:$0xff] %v1165
    %1532 = vst [vmem:[#allocation5 + $0xb28] sm:$0xff] %v910
    %1533 = vst [vmem:[#allocation5 + $0xb30] sm:$0xff] %v1038
    %1534 = vst [vmem:[#allocation5 + $0xb38] sm:$0xff] %v1166
    %1535 = vst [vmem:[#allocation5 + $0xb40] sm:$0xff] %v911
    %1536 = vst [vmem:[#allocation5 + $0xb48] sm:$0xff] %v1039
    %1537 = vst [vmem:[#allocation5 + $0xb50] sm:$0xff] %v1167
    %1538 = vst [vmem:[#allocation5 + $0xb58] sm:$0xff] %v912
    %1539 = vst [vmem:[#allocation5 + $0xb60] sm:$0xff] %v1040
    %1540 = vst [vmem:[#allocation5 + $0xb68] sm:$0xff] %v1168
    %1541 = vst [vmem:[#allocation5 + $0xb70] sm:$0xff] %v913
    %1542 = vst [vmem:[#allocation5 + $0xb78] sm:$0xff] %v1041
    %1543 = vst [vmem:[#allocation5 + $0xb80] sm:$0xff] %v1169
    %1544 = vst [vmem:[#allocation5 + $0xb88] sm:$0xff] %v914
    %1545 = vst [vmem:[#allocation5 + $0xb90] sm:$0xff] %v1042
    %1546 = vst [vmem:[#allocation5 + $0xb98] sm:$0xff] %v1170
    %1547 = vst [vmem:[#allocation5 + $0xba0] sm:$0xff] %v915
    %1548 = vst [vmem:[#allocation5 + $0xba8] sm:$0xff] %v1043
    %1549 = vst [vmem:[#allocation5 + $0xbb0] sm:$0xff] %v1171
    %1550 = vst [vmem:[#allocation5 + $0xbb8] sm:$0xff] %v916
    %1551 = vst [vmem:[#allocation5 + $0xbc0] sm:$0xff] %v1044
    %1552 = vst [vmem:[#allocation5 + $0xbc8] sm:$0xff] %v1172
    %1553 = vst [vmem:[#allocation5 + $0xbd0] sm:$0xff] %v917
    %1554 = vst [vmem:[#allocation5 + $0xbd8] sm:$0xff] %v1045
    %1555 = vst [vmem:[#allocation5 + $0xbe0] sm:$0xff] %v1173
    %1556 = vst [vmem:[#allocation5 + $0xbe8] sm:$0xff] %v918
    %1557 = vst [vmem:[#allocation5 + $0xbf0] sm:$0xff] %v1046
    %1558 = vst [vmem:[#allocation5 + $0xbf8] sm:$0xff] %v1174
    // Predicated region
    $region10: #{tpu_custom_call.1} parent=1 // pred_check
      _
    $region11: #{tpu_custom_call.1} parent=1 // pred_check_branch
      %1560 = sbr.rel (0) target = $region13
    $region12: #{tpu_custom_call.1} parent=1 // pred_region
      %s1562 = ssub.s32 49152, 49152
      %1563 = vsyncadd [#allocation4], %s1562
      %s1564 = sshll.u32 [#allocation5], 4
      %s1565 = int_to_ptr.vmem [resolvable:$true] %s1564
      %1570 = dma.vmem_to_hbm [thread:$0]  %s1565, 49152, %s1, [#allocation4], 384, 384, 24
    $region13: #{tpu_custom_call.1} parent=1 // pred_fallthru
      _
    // Predicated region
    $region14: #{tpu_custom_call.1} parent=1 // pred_check
      _
    $region15: #{tpu_custom_call.1} parent=1 // pred_check_branch
      %1572 = sbr.rel (0) target = $region17
    $region16: #{tpu_custom_call.1} parent=1 // pred_region
      %1573 = dma.done [#allocation4], 49152
    $region17: #{tpu_custom_call.1} parent=1 // pred_fallthru
      _
    %1574 = vsyncpa [#allocation3], 1
    %1575 = vsyncpa [#allocation4], 1

</llo_original>
